<compile_context>
chip_gen: v7x
topology: tpu7x:2x2x1
jax: 0.10.0
libtpu: 0.0.40
codegen_flags: <defaults>
</compile_context>

<pallas_src>
import functools

import numpy as np
import jax
import jax.numpy as jnp
from jax import lax
from jax.experimental import pallas as pl
from jax.experimental.pallas import tpu as pltpu


# ----------------------------------------------------------------- helpers --

def _interp_matrix(out_size: int, in_size: int) -> np.ndarray:
    """1-D interpolation matrix for nn.Upsample(mode='bilinear',
    align_corners=False): out = M @ in."""
    m = np.zeros((out_size, in_size), np.float64)
    scale = in_size / out_size
    for o in range(out_size):
        src = (o + 0.5) * scale - 0.5
        f = int(np.floor(src))
        frac = src - f
        i0 = min(max(f, 0), in_size - 1)
        i1 = min(max(f + 1, 0), in_size - 1)
        m[o, i0] += 1.0 - frac
        m[o, i1] += frac
    return m.astype(np.float32)


def _tap_masks(n: int, h: int, w: int) -> np.ndarray:
    """(9, n*h*w) 0/1 masks: masks[t, p] == 1 iff tap t (3x3 neighbourhood,
    zero padding) has an in-bounds neighbour at flattened position p."""
    p = np.arange(n * h * w)
    yy = (p // w) % h
    xx = p % w
    masks = np.zeros((9, n * h * w), np.float32)
    for ky in range(3):
        for kx in range(3):
            oy, ox = ky - 1, kx - 1
            valid = (yy + oy >= 0) & (yy + oy < h) & (xx + ox >= 0) & (xx + ox < w)
            masks[ky * 3 + kx] = valid.astype(np.float32)
    return masks


def _w_slab(w):
    """OIHW conv weight -> (Cout, 9*Cin) slab, columns ordered (ky, kx, ci)."""
    cout, cin = w.shape[0], w.shape[1]
    return jnp.transpose(w, (0, 2, 3, 1)).reshape(cout, 9 * cin).astype(jnp.float32)


def _col(v):
    """(C,) -> (C, 1) column for lane-broadcast inside the kernel."""
    return v.reshape(-1, 1).astype(jnp.float32)


# ------------------------------------------------------------------ kernel --

def _edge_kernel(x1_ref, x2_ref, up_ref, mask_ref,
                 w1_ref, b1_ref, g1_ref, a1_ref,
                 w2_ref, b2_ref, g2_ref, a2_ref,
                 w3_ref, b3_ref, g3_ref, a3_ref,
                 w4_ref, b4_ref, g4_ref, a4_ref,
                 out_ref, *, img_w: int):
    masks = mask_ref[...]                     # (9, P)
    P = masks.shape[1]

    def conv_bn_relu(x, w_ref, b_ref, g_ref, beta_ref):
        # x: (Cin, P) slab. 3x3 same-conv as one im2col matmul (K = 9*Cin),
        # then BatchNorm2d (batch stats, biased var, eps=1e-5) + ReLU.
        taps = []
        for ky in range(3):
            for kx in range(3):
                d = (ky - 1) * img_w + (kx - 1)          # flat neighbour offset
                if d == 0:
                    taps.append(x)                       # centre tap, always valid
                else:
                    t = ky * 3 + kx
                    shifted = pltpu.roll(x, (-d) % P, axis=1)   # shifted[p] = x[p + d]
                    taps.append(shifted * masks[t:t + 1, :])    # zero the padding taps
        patches = jnp.concatenate(taps, axis=0)          # (9*Cin, P), lane dense
        y = jnp.dot(w_ref[...], patches,
                    preferred_element_type=jnp.float32) + b_ref[...]
        mean = jnp.mean(y, axis=1, keepdims=True)        # per-channel over (N,H,W)
        var = jnp.mean((y - mean) * (y - mean), axis=1, keepdims=True)
        y = (y - mean) * lax.rsqrt(var + 1e-5) * g_ref[...] + beta_ref[...]
        return jnp.maximum(y, 0.0)

    # branch 1: relu(bn1(conv1(x1)))
    x1b = conv_bn_relu(x1_ref[...], w1_ref, b1_ref, g1_ref, a1_ref)

    # branch 2: bilinear 2x upsample (single matmul) then relu(bn2(conv2(.)))
    x2u = jnp.dot(x2_ref[...], up_ref[...], preferred_element_type=jnp.float32)
    x2b = conv_bn_relu(x2u, w2_ref, b2_ref, g2_ref, a2_ref)

    # channel concat (rows) -> relu(bn3(conv3(.)))
    xc = conv_bn_relu(jnp.concatenate([x1b, x2b], axis=0),
                      w3_ref, b3_ref, g3_ref, a3_ref)

    # spatial attention: sigmoid(channel max), residual scaling
    xmax = jnp.max(xc, axis=0, keepdims=True)            # (1, P)
    xsp = 1.0 / (1.0 + jnp.exp(-xmax))
    x3 = xc * xsp + xc

    # output stage: relu(bn4(conv4(x3))) -> lane-dense (C, P) store
    out_ref[...] = conv_bn_relu(x3, w4_ref, b4_ref, g4_ref, a4_ref)


# ----------------------------------------------------------------- wrapper --

def edge_forward(x1, x2,
                 w1, b1, g1, be1,
                 w2, b2, g2, be2,
                 w3, b3, g3, be3,
                 w4, b4, g4, be4):
    """x1: (N, C, H, W); x2: (N, C, H//2, W//2). Conv weights in OIHW."""
    N, C, H, W = x1.shape
    _, _, Hh, Wh = x2.shape
    assert (2 * Hh, 2 * Wh) == (H, W)
    P = N * H * W
    Q = N * Hh * Wh

    # lane-dense slab layout: channels on sublanes, (n, y, x) flattened on lanes
    x1_slab = jnp.transpose(x1, (1, 0, 2, 3)).reshape(C, P).astype(jnp.float32)
    x2_slab = jnp.transpose(x2, (1, 0, 2, 3)).reshape(C, Q).astype(jnp.float32)

    # bilinear 2x upsample operator, applied from the right:
    #   up = x2_slab @ (I_N (x) Uh (x) Uw)^T
    uh = _interp_matrix(H, Hh)
    uw = _interp_matrix(W, Wh)
    up_mat = jnp.asarray(
        np.kron(np.eye(N, dtype=np.float32), np.kron(uh, uw)).T.astype(np.float32))  # (Q, P)

    masks = jnp.asarray(_tap_masks(N, H, W))                                          # (9, P)

    args = [x1_slab, x2_slab, up_mat, masks,
            _w_slab(w1), _col(b1), _col(g1), _col(be1),
            _w_slab(w2), _col(b2), _col(g2), _col(be2),
            _w_slab(w3), _col(b3), _col(g3), _col(be3),
            _w_slab(w4), _col(b4), _col(g4), _col(be4)]

    kernel = functools.partial(_edge_kernel, img_w=W)

    out_slab = pl.pallas_call(
        kernel,
        out_shape=jax.ShapeDtypeStruct((C, P), jnp.float32),
        grid_spec=pltpu.PrefetchScalarGridSpec(
            num_scalar_prefetch=0,
            grid=(1,),   # whole batch in one step: everything stays in VMEM
            in_specs=[pl.BlockSpec(a.shape, lambda i: (0, 0)) for a in args],
            out_specs=pl.BlockSpec((C, P), lambda i: (0, 0)),
        ),
        compiler_params=pltpu.CompilerParams(dimension_semantics=("arbitrary",)),
    )(*args)

    # (C, N*H*W) -> (N, C, H, W) to match the PyTorch output layout.
    return jnp.transpose(out_slab.reshape(C, N, H, W), (1, 0, 2, 3))


# --------------------------------------------------------------- reference --

def _upsample2x_bilinear_ref(x):
    """PyTorch nn.Upsample(scale_factor=2, mode='bilinear') semantics (NCHW)."""
    n, c, hh, wh = x.shape
    h, w = 2 * hh, 2 * wh

    def coords(out_size, in_size):
        src = (jnp.arange(out_size) + 0.5) * (in_size / out_size) - 0.5
        f = jnp.floor(src)
        frac = src - f
        i0 = jnp.clip(f, 0, in_size - 1).astype(jnp.int32)
        i1 = jnp.clip(f + 1, 0, in_size - 1).astype(jnp.int32)
        return i0, i1, frac

    y0, y1, fy = coords(h, hh)
    x0, x1, fx = coords(w, wh)
    rows = (x[:, :, y0, :] * (1.0 - fy)[None, None, :, None]
            + x[:, :, y1, :] * fy[None, None, :, None])
    return rows[:, :, :, x0] * (1.0 - fx) + rows[:, :, :, x1] * fx


def edge_reference(x1, x2,
                   w1, b1, g1, be1, w2, b2, g2, be2,
                   w3, b3, g3, be3, w4, b4, g4, be4):
    dn = ('NCHW', 'OIHW', 'NCHW')

    def conv(x, w, b):
        y = lax.conv_general_dilated(x, w, (1, 1), 'SAME', dimension_numbers=dn,
                                     precision=lax.Precision.HIGHEST)
        return y + b[None, :, None, None]

    def bn_relu(x, g, beta):
        mean = x.mean(axis=(0, 2, 3), keepdims=True)
        var = ((x - mean) ** 2).mean(axis=(0, 2, 3), keepdims=True)
        y = (x - mean) / jnp.sqrt(var + 1e-5) * g[None, :, None, None] + beta[None, :, None, None]
        return jnp.maximum(y, 0.0)

    x2u = _upsample2x_bilinear_ref(x2)
    a1 = bn_relu(conv(x1, w1, b1), g1, be1)
    a2 = bn_relu(conv(x2u, w2, b2), g2, be2)
    xc = bn_relu(conv(jnp.concatenate([a1, a2], axis=1), w3, b3), g3, be3)
    xmax = jnp.max(xc, axis=1, keepdims=True)
    xsp = jax.nn.sigmoid(xmax)
    x3 = xc * xsp + xc
    return bn_relu(conv(x3, w4, b4), g4, be4)


# -------------------------------------------------------------------- main --

if __name__ == "__main__":
    N, C, H, W = 2, 4, 16, 16
    Hh, Wh = H // 2, W // 2

    key = jax.random.PRNGKey(0)
    ks = jax.random.split(key, 20)

    x1 = jax.random.normal(ks[0], (N, C, H, W), jnp.float32)
    x2 = jax.random.normal(ks[1], (N, C, Hh, Wh), jnp.float32)

    def conv_params(kw, kb, cin):
        bound = 1.0 / np.sqrt(cin * 9)
        w = jax.random.uniform(kw, (C, cin, 3, 3), jnp.float32, -bound, bound)
        b = jax.random.uniform(kb, (C,), jnp.float32, -bound, bound)
        return w, b

    def bn_params(kg, kb):
        g = 1.0 + 0.1 * jax.random.normal(kg, (C,), jnp.float32)
        be = 0.1 * jax.random.normal(kb, (C,), jnp.float32)
        return g, be

    w1, b1 = conv_params(ks[2], ks[3], C)
    w2, b2 = conv_params(ks[4], ks[5], C)
    w3, b3 = conv_params(ks[6], ks[7], 2 * C)
    w4, b4 = conv_params(ks[8], ks[9], C)
    g1, be1 = bn_params(ks[10], ks[11])
    g2, be2 = bn_params(ks[12], ks[13])
    g3, be3 = bn_params(ks[14], ks[15])
    g4, be4 = bn_params(ks[16], ks[17])

    params = (w1, b1, g1, be1, w2, b2, g2, be2,
              w3, b3, g3, be3, w4, b4, g4, be4)

    out = jax.jit(edge_forward)(x1, x2, *params)
    out = jax.block_until_ready(out)

    ref = edge_reference(x1, x2, *params)
    ref = jax.block_until_ready(ref)

    assert out.shape == (N, C, H, W)
    np.testing.assert_allclose(np.asarray(out), np.asarray(ref), rtol=5e-4, atol=5e-4)

    print("KERNEL_OK")
</pallas_src>

<mosaic_0001>
module attributes {stable_mosaic.version = 11 : i64} {
  func.func @_edge_kernel(%arg0: i32, %arg1: memref<4x512xf32, #tpu.memory_space<vmem>>, %arg2: memref<4x128xf32, #tpu.memory_space<vmem>>, %arg3: memref<128x512xf32, #tpu.memory_space<vmem>>, %arg4: memref<9x512xf32, #tpu.memory_space<vmem>>, %arg5: memref<4x36xf32, #tpu.memory_space<vmem>>, %arg6: memref<4x1xf32, #tpu.memory_space<vmem>>, %arg7: memref<4x1xf32, #tpu.memory_space<vmem>>, %arg8: memref<4x1xf32, #tpu.memory_space<vmem>>, %arg9: memref<4x36xf32, #tpu.memory_space<vmem>>, %arg10: memref<4x1xf32, #tpu.memory_space<vmem>>, %arg11: memref<4x1xf32, #tpu.memory_space<vmem>>, %arg12: memref<4x1xf32, #tpu.memory_space<vmem>>, %arg13: memref<4x72xf32, #tpu.memory_space<vmem>>, %arg14: memref<4x1xf32, #tpu.memory_space<vmem>>, %arg15: memref<4x1xf32, #tpu.memory_space<vmem>>, %arg16: memref<4x1xf32, #tpu.memory_space<vmem>>, %arg17: memref<4x36xf32, #tpu.memory_space<vmem>>, %arg18: memref<4x1xf32, #tpu.memory_space<vmem>>, %arg19: memref<4x1xf32, #tpu.memory_space<vmem>>, %arg20: memref<4x1xf32, #tpu.memory_space<vmem>>, %arg21: memref<4x512xf32, #tpu.memory_space<vmem>>) attributes {dimension_semantics = [#tpu.dimension_semantics<arbitrary>], iteration_bounds = array<i64: 1>, scalar_prefetch = 0 : i64, scratch_operands = 0 : i64, tpu.core_type = #tpu.core_type<tc>, window_params = [{pipeline_mode = #tpu.pipeline_mode<synchronous>, transform_indices = @transform_0, window_bounds = array<i64: 4, 512>}, {pipeline_mode = #tpu.pipeline_mode<synchronous>, transform_indices = @transform_1, window_bounds = array<i64: 4, 128>}, {pipeline_mode = #tpu.pipeline_mode<synchronous>, transform_indices = @transform_2, window_bounds = array<i64: 128, 512>}, {pipeline_mode = #tpu.pipeline_mode<synchronous>, transform_indices = @transform_3, window_bounds = array<i64: 9, 512>}, {pipeline_mode = #tpu.pipeline_mode<synchronous>, transform_indices = @transform_4, window_bounds = array<i64: 4, 36>}, {pipeline_mode = #tpu.pipeline_mode<synchronous>, transform_indices = @transform_5, window_bounds = array<i64: 4, 1>}, {pipeline_mode = #tpu.pipeline_mode<synchronous>, transform_indices = @transform_6, window_bounds = array<i64: 4, 1>}, {pipeline_mode = #tpu.pipeline_mode<synchronous>, transform_indices = @transform_7, window_bounds = array<i64: 4, 1>}, {pipeline_mode = #tpu.pipeline_mode<synchronous>, transform_indices = @transform_8, window_bounds = array<i64: 4, 36>}, {pipeline_mode = #tpu.pipeline_mode<synchronous>, transform_indices = @transform_9, window_bounds = array<i64: 4, 1>}, {pipeline_mode = #tpu.pipeline_mode<synchronous>, transform_indices = @transform_10, window_bounds = array<i64: 4, 1>}, {pipeline_mode = #tpu.pipeline_mode<synchronous>, transform_indices = @transform_11, window_bounds = array<i64: 4, 1>}, {pipeline_mode = #tpu.pipeline_mode<synchronous>, transform_indices = @transform_12, window_bounds = array<i64: 4, 72>}, {pipeline_mode = #tpu.pipeline_mode<synchronous>, transform_indices = @transform_13, window_bounds = array<i64: 4, 1>}, {pipeline_mode = #tpu.pipeline_mode<synchronous>, transform_indices = @transform_14, window_bounds = array<i64: 4, 1>}, {pipeline_mode = #tpu.pipeline_mode<synchronous>, transform_indices = @transform_15, window_bounds = array<i64: 4, 1>}, {pipeline_mode = #tpu.pipeline_mode<synchronous>, transform_indices = @transform_16, window_bounds = array<i64: 4, 36>}, {pipeline_mode = #tpu.pipeline_mode<synchronous>, transform_indices = @transform_17, window_bounds = array<i64: 4, 1>}, {pipeline_mode = #tpu.pipeline_mode<synchronous>, transform_indices = @transform_18, window_bounds = array<i64: 4, 1>}, {pipeline_mode = #tpu.pipeline_mode<synchronous>, transform_indices = @transform_19, window_bounds = array<i64: 4, 1>}, {pipeline_mode = #tpu.pipeline_mode<synchronous>, transform_indices = @transform_20, window_bounds = array<i64: 4, 512>}]} {
    %c0 = arith.constant 0 : index
    %c0_0 = arith.constant 0 : index
    %0 = vector.load %arg4[%c0, %c0_0] : memref<9x512xf32, #tpu.memory_space<vmem>>, vector<9x512xf32>
    %c0_1 = arith.constant 0 : index
    %c0_2 = arith.constant 0 : index
    %1 = vector.load %arg1[%c0_1, %c0_2] : memref<4x512xf32, #tpu.memory_space<vmem>>, vector<4x512xf32>
    %c17_i32 = arith.constant 17 : i32
    %2 = tpu.dynamic_rotate %1 by %c17_i32 dim 1 : vector<4x512xf32>, i32 -> vector<4x512xf32>
    %3 = vector.extract_strided_slice %0 {offsets = [0, 0], sizes = [1, 512], strides = [1, 1]} : vector<9x512xf32> to vector<1x512xf32>
    %4 = vector.broadcast %3 : vector<1x512xf32> to vector<4x512xf32>
    %5 = arith.mulf %2, %4 : vector<4x512xf32>
    %c16_i32 = arith.constant 16 : i32
    %6 = tpu.dynamic_rotate %1 by %c16_i32 dim 1 : vector<4x512xf32>, i32 -> vector<4x512xf32>
    %7 = vector.extract_strided_slice %0 {offsets = [1, 0], sizes = [1, 512], strides = [1, 1]} : vector<9x512xf32> to vector<1x512xf32>
    %8 = vector.broadcast %7 : vector<1x512xf32> to vector<4x512xf32>
    %9 = arith.mulf %6, %8 : vector<4x512xf32>
    %c15_i32 = arith.constant 15 : i32
    %10 = tpu.dynamic_rotate %1 by %c15_i32 dim 1 : vector<4x512xf32>, i32 -> vector<4x512xf32>
    %11 = vector.extract_strided_slice %0 {offsets = [2, 0], sizes = [1, 512], strides = [1, 1]} : vector<9x512xf32> to vector<1x512xf32>
    %12 = vector.broadcast %11 : vector<1x512xf32> to vector<4x512xf32>
    %13 = arith.mulf %10, %12 : vector<4x512xf32>
    %c1_i32 = arith.constant 1 : i32
    %14 = tpu.dynamic_rotate %1 by %c1_i32 dim 1 : vector<4x512xf32>, i32 -> vector<4x512xf32>
    %15 = vector.extract_strided_slice %0 {offsets = [3, 0], sizes = [1, 512], strides = [1, 1]} : vector<9x512xf32> to vector<1x512xf32>
    %16 = vector.broadcast %15 : vector<1x512xf32> to vector<4x512xf32>
    %17 = arith.mulf %14, %16 : vector<4x512xf32>
    %c511_i32 = arith.constant 511 : i32
    %18 = tpu.dynamic_rotate %1 by %c511_i32 dim 1 : vector<4x512xf32>, i32 -> vector<4x512xf32>
    %19 = vector.extract_strided_slice %0 {offsets = [5, 0], sizes = [1, 512], strides = [1, 1]} : vector<9x512xf32> to vector<1x512xf32>
    %20 = vector.broadcast %19 : vector<1x512xf32> to vector<4x512xf32>
    %21 = arith.mulf %18, %20 : vector<4x512xf32>
    %c497_i32 = arith.constant 497 : i32
    %22 = tpu.dynamic_rotate %1 by %c497_i32 dim 1 : vector<4x512xf32>, i32 -> vector<4x512xf32>
    %23 = vector.extract_strided_slice %0 {offsets = [6, 0], sizes = [1, 512], strides = [1, 1]} : vector<9x512xf32> to vector<1x512xf32>
    %24 = vector.broadcast %23 : vector<1x512xf32> to vector<4x512xf32>
    %25 = arith.mulf %22, %24 : vector<4x512xf32>
    %c496_i32 = arith.constant 496 : i32
    %26 = tpu.dynamic_rotate %1 by %c496_i32 dim 1 : vector<4x512xf32>, i32 -> vector<4x512xf32>
    %27 = vector.extract_strided_slice %0 {offsets = [7, 0], sizes = [1, 512], strides = [1, 1]} : vector<9x512xf32> to vector<1x512xf32>
    %28 = vector.broadcast %27 : vector<1x512xf32> to vector<4x512xf32>
    %29 = arith.mulf %26, %28 : vector<4x512xf32>
    %c495_i32 = arith.constant 495 : i32
    %30 = tpu.dynamic_rotate %1 by %c495_i32 dim 1 : vector<4x512xf32>, i32 -> vector<4x512xf32>
    %31 = vector.extract_strided_slice %0 {offsets = [8, 0], sizes = [1, 512], strides = [1, 1]} : vector<9x512xf32> to vector<1x512xf32>
    %32 = vector.broadcast %31 : vector<1x512xf32> to vector<4x512xf32>
    %33 = arith.mulf %30, %32 : vector<4x512xf32>
    %34 = tpu.concatenate %5, %9, %13, %17, %1, %21, %25, %29, %33 in 0 : vector<4x512xf32>, vector<4x512xf32>, vector<4x512xf32>, vector<4x512xf32>, vector<4x512xf32>, vector<4x512xf32>, vector<4x512xf32>, vector<4x512xf32>, vector<4x512xf32> -> vector<36x512xf32>
    %c0_3 = arith.constant 0 : index
    %c0_4 = arith.constant 0 : index
    %35 = vector.load %arg5[%c0_3, %c0_4] : memref<4x36xf32, #tpu.memory_space<vmem>>, vector<4x36xf32>
    %cst = arith.constant dense<0.000000e+00> : vector<4x512xf32>
    %36 = tpu.matmul %35, %34, %cst {dimension_numbers = #tpu.dot_dimension_numbers<[1], [0], [0], [1], [0, 0, 1, 1], [], []>} : vector<4x36xf32>, vector<36x512xf32>, vector<4x512xf32> -> vector<4x512xf32>
    %c0_5 = arith.constant 0 : index
    %c0_6 = arith.constant 0 : index
    %37 = vector.load %arg6[%c0_5, %c0_6] : memref<4x1xf32, #tpu.memory_space<vmem>>, vector<4x1xf32>
    %38 = vector.broadcast %37 : vector<4x1xf32> to vector<4x512xf32>
    %39 = arith.addf %36, %38 : vector<4x512xf32>
    %cst_7 = arith.constant dense<0.000000e+00> : vector<4xf32>
    %40 = vector.multi_reduction <add>, %39, %cst_7 [1] : vector<4x512xf32> to vector<4xf32>
    %41 = vector.shape_cast %40 : vector<4xf32> to vector<4x1xf32>
    %cst_8 = arith.constant 5.120000e+02 : f32
    %42 = vector.broadcast %cst_8 : f32 to vector<4x1xf32>
    %43 = arith.divf %41, %42 : vector<4x1xf32>
    %44 = vector.broadcast %43 : vector<4x1xf32> to vector<4x512xf32>
    %45 = arith.subf %39, %44 : vector<4x512xf32>
    %46 = vector.broadcast %43 : vector<4x1xf32> to vector<4x512xf32>
    %47 = arith.subf %39, %46 : vector<4x512xf32>
    %48 = arith.mulf %45, %47 : vector<4x512xf32>
    %cst_9 = arith.constant dense<0.000000e+00> : vector<4xf32>
    %49 = vector.multi_reduction <add>, %48, %cst_9 [1] : vector<4x512xf32> to vector<4xf32>
    %50 = vector.shape_cast %49 : vector<4xf32> to vector<4x1xf32>
    %cst_10 = arith.constant 5.120000e+02 : f32
    %51 = vector.broadcast %cst_10 : f32 to vector<4x1xf32>
    %52 = arith.divf %50, %51 : vector<4x1xf32>
    %53 = vector.broadcast %43 : vector<4x1xf32> to vector<4x512xf32>
    %54 = arith.subf %39, %53 : vector<4x512xf32>
    %cst_11 = arith.constant 9.99999974E-6 : f32
    %55 = vector.broadcast %cst_11 : f32 to vector<4x1xf32>
    %56 = arith.addf %52, %55 : vector<4x1xf32>
    %57 = math.rsqrt %56 : vector<4x1xf32>
    %58 = vector.broadcast %57 : vector<4x1xf32> to vector<4x512xf32>
    %59 = arith.mulf %54, %58 : vector<4x512xf32>
    %c0_12 = arith.constant 0 : index
    %c0_13 = arith.constant 0 : index
    %60 = vector.load %arg7[%c0_12, %c0_13] : memref<4x1xf32, #tpu.memory_space<vmem>>, vector<4x1xf32>
    %61 = vector.broadcast %60 : vector<4x1xf32> to vector<4x512xf32>
    %62 = arith.mulf %59, %61 : vector<4x512xf32>
    %c0_14 = arith.constant 0 : index
    %c0_15 = arith.constant 0 : index
    %63 = vector.load %arg8[%c0_14, %c0_15] : memref<4x1xf32, #tpu.memory_space<vmem>>, vector<4x1xf32>
    %64 = vector.broadcast %63 : vector<4x1xf32> to vector<4x512xf32>
    %65 = arith.addf %62, %64 : vector<4x512xf32>
    %cst_16 = arith.constant 0.000000e+00 : f32
    %66 = vector.broadcast %cst_16 : f32 to vector<4x512xf32>
    %67 = arith.maximumf %65, %66 : vector<4x512xf32>
    %c0_17 = arith.constant 0 : index
    %c0_18 = arith.constant 0 : index
    %68 = vector.load %arg2[%c0_17, %c0_18] : memref<4x128xf32, #tpu.memory_space<vmem>>, vector<4x128xf32>
    %c0_19 = arith.constant 0 : index
    %c0_20 = arith.constant 0 : index
    %69 = vector.load %arg3[%c0_19, %c0_20] : memref<128x512xf32, #tpu.memory_space<vmem>>, vector<128x512xf32>
    %cst_21 = arith.constant dense<0.000000e+00> : vector<4x512xf32>
    %70 = tpu.matmul %68, %69, %cst_21 {dimension_numbers = #tpu.dot_dimension_numbers<[1], [0], [0], [1], [0, 0, 1, 1], [], []>} : vector<4x128xf32>, vector<128x512xf32>, vector<4x512xf32> -> vector<4x512xf32>
    %c17_i32_22 = arith.constant 17 : i32
    %71 = tpu.dynamic_rotate %70 by %c17_i32_22 dim 1 : vector<4x512xf32>, i32 -> vector<4x512xf32>
    %72 = vector.extract_strided_slice %0 {offsets = [0, 0], sizes = [1, 512], strides = [1, 1]} : vector<9x512xf32> to vector<1x512xf32>
    %73 = vector.broadcast %72 : vector<1x512xf32> to vector<4x512xf32>
    %74 = arith.mulf %71, %73 : vector<4x512xf32>
    %c16_i32_23 = arith.constant 16 : i32
    %75 = tpu.dynamic_rotate %70 by %c16_i32_23 dim 1 : vector<4x512xf32>, i32 -> vector<4x512xf32>
    %76 = vector.extract_strided_slice %0 {offsets = [1, 0], sizes = [1, 512], strides = [1, 1]} : vector<9x512xf32> to vector<1x512xf32>
    %77 = vector.broadcast %76 : vector<1x512xf32> to vector<4x512xf32>
    %78 = arith.mulf %75, %77 : vector<4x512xf32>
    %c15_i32_24 = arith.constant 15 : i32
    %79 = tpu.dynamic_rotate %70 by %c15_i32_24 dim 1 : vector<4x512xf32>, i32 -> vector<4x512xf32>
    %80 = vector.extract_strided_slice %0 {offsets = [2, 0], sizes = [1, 512], strides = [1, 1]} : vector<9x512xf32> to vector<1x512xf32>
    %81 = vector.broadcast %80 : vector<1x512xf32> to vector<4x512xf32>
    %82 = arith.mulf %79, %81 : vector<4x512xf32>
    %c1_i32_25 = arith.constant 1 : i32
    %83 = tpu.dynamic_rotate %70 by %c1_i32_25 dim 1 : vector<4x512xf32>, i32 -> vector<4x512xf32>
    %84 = vector.extract_strided_slice %0 {offsets = [3, 0], sizes = [1, 512], strides = [1, 1]} : vector<9x512xf32> to vector<1x512xf32>
    %85 = vector.broadcast %84 : vector<1x512xf32> to vector<4x512xf32>
    %86 = arith.mulf %83, %85 : vector<4x512xf32>
    %c511_i32_26 = arith.constant 511 : i32
    %87 = tpu.dynamic_rotate %70 by %c511_i32_26 dim 1 : vector<4x512xf32>, i32 -> vector<4x512xf32>
    %88 = vector.extract_strided_slice %0 {offsets = [5, 0], sizes = [1, 512], strides = [1, 1]} : vector<9x512xf32> to vector<1x512xf32>
    %89 = vector.broadcast %88 : vector<1x512xf32> to vector<4x512xf32>
    %90 = arith.mulf %87, %89 : vector<4x512xf32>
    %c497_i32_27 = arith.constant 497 : i32
    %91 = tpu.dynamic_rotate %70 by %c497_i32_27 dim 1 : vector<4x512xf32>, i32 -> vector<4x512xf32>
    %92 = vector.extract_strided_slice %0 {offsets = [6, 0], sizes = [1, 512], strides = [1, 1]} : vector<9x512xf32> to vector<1x512xf32>
    %93 = vector.broadcast %92 : vector<1x512xf32> to vector<4x512xf32>
    %94 = arith.mulf %91, %93 : vector<4x512xf32>
    %c496_i32_28 = arith.constant 496 : i32
    %95 = tpu.dynamic_rotate %70 by %c496_i32_28 dim 1 : vector<4x512xf32>, i32 -> vector<4x512xf32>
    %96 = vector.extract_strided_slice %0 {offsets = [7, 0], sizes = [1, 512], strides = [1, 1]} : vector<9x512xf32> to vector<1x512xf32>
    %97 = vector.broadcast %96 : vector<1x512xf32> to vector<4x512xf32>
    %98 = arith.mulf %95, %97 : vector<4x512xf32>
    %c495_i32_29 = arith.constant 495 : i32
    %99 = tpu.dynamic_rotate %70 by %c495_i32_29 dim 1 : vector<4x512xf32>, i32 -> vector<4x512xf32>
    %100 = vector.extract_strided_slice %0 {offsets = [8, 0], sizes = [1, 512], strides = [1, 1]} : vector<9x512xf32> to vector<1x512xf32>
    %101 = vector.broadcast %100 : vector<1x512xf32> to vector<4x512xf32>
    %102 = arith.mulf %99, %101 : vector<4x512xf32>
    %103 = tpu.concatenate %74, %78, %82, %86, %70, %90, %94, %98, %102 in 0 : vector<4x512xf32>, vector<4x512xf32>, vector<4x512xf32>, vector<4x512xf32>, vector<4x512xf32>, vector<4x512xf32>, vector<4x512xf32>, vector<4x512xf32>, vector<4x512xf32> -> vector<36x512xf32>
    %c0_30 = arith.constant 0 : index
    %c0_31 = arith.constant 0 : index
    %104 = vector.load %arg9[%c0_30, %c0_31] : memref<4x36xf32, #tpu.memory_space<vmem>>, vector<4x36xf32>
    %cst_32 = arith.constant dense<0.000000e+00> : vector<4x512xf32>
    %105 = tpu.matmul %104, %103, %cst_32 {dimension_numbers = #tpu.dot_dimension_numbers<[1], [0], [0], [1], [0, 0, 1, 1], [], []>} : vector<4x36xf32>, vector<36x512xf32>, vector<4x512xf32> -> vector<4x512xf32>
    %c0_33 = arith.constant 0 : index
    %c0_34 = arith.constant 0 : index
    %106 = vector.load %arg10[%c0_33, %c0_34] : memref<4x1xf32, #tpu.memory_space<vmem>>, vector<4x1xf32>
    %107 = vector.broadcast %106 : vector<4x1xf32> to vector<4x512xf32>
    %108 = arith.addf %105, %107 : vector<4x512xf32>
    %cst_35 = arith.constant dense<0.000000e+00> : vector<4xf32>
    %109 = vector.multi_reduction <add>, %108, %cst_35 [1] : vector<4x512xf32> to vector<4xf32>
    %110 = vector.shape_cast %109 : vector<4xf32> to vector<4x1xf32>
    %cst_36 = arith.constant 5.120000e+02 : f32
    %111 = vector.broadcast %cst_36 : f32 to vector<4x1xf32>
    %112 = arith.divf %110, %111 : vector<4x1xf32>
    %113 = vector.broadcast %112 : vector<4x1xf32> to vector<4x512xf32>
    %114 = arith.subf %108, %113 : vector<4x512xf32>
    %115 = vector.broadcast %112 : vector<4x1xf32> to vector<4x512xf32>
    %116 = arith.subf %108, %115 : vector<4x512xf32>
    %117 = arith.mulf %114, %116 : vector<4x512xf32>
    %cst_37 = arith.constant dense<0.000000e+00> : vector<4xf32>
    %118 = vector.multi_reduction <add>, %117, %cst_37 [1] : vector<4x512xf32> to vector<4xf32>
    %119 = vector.shape_cast %118 : vector<4xf32> to vector<4x1xf32>
    %cst_38 = arith.constant 5.120000e+02 : f32
    %120 = vector.broadcast %cst_38 : f32 to vector<4x1xf32>
    %121 = arith.divf %119, %120 : vector<4x1xf32>
    %122 = vector.broadcast %112 : vector<4x1xf32> to vector<4x512xf32>
    %123 = arith.subf %108, %122 : vector<4x512xf32>
    %cst_39 = arith.constant 9.99999974E-6 : f32
    %124 = vector.broadcast %cst_39 : f32 to vector<4x1xf32>
    %125 = arith.addf %121, %124 : vector<4x1xf32>
    %126 = math.rsqrt %125 : vector<4x1xf32>
    %127 = vector.broadcast %126 : vector<4x1xf32> to vector<4x512xf32>
    %128 = arith.mulf %123, %127 : vector<4x512xf32>
    %c0_40 = arith.constant 0 : index
    %c0_41 = arith.constant 0 : index
    %129 = vector.load %arg11[%c0_40, %c0_41] : memref<4x1xf32, #tpu.memory_space<vmem>>, vector<4x1xf32>
    %130 = vector.broadcast %129 : vector<4x1xf32> to vector<4x512xf32>
    %131 = arith.mulf %128, %130 : vector<4x512xf32>
    %c0_42 = arith.constant 0 : index
    %c0_43 = arith.constant 0 : index
    %132 = vector.load %arg12[%c0_42, %c0_43] : memref<4x1xf32, #tpu.memory_space<vmem>>, vector<4x1xf32>
    %133 = vector.broadcast %132 : vector<4x1xf32> to vector<4x512xf32>
    %134 = arith.addf %131, %133 : vector<4x512xf32>
    %cst_44 = arith.constant 0.000000e+00 : f32
    %135 = vector.broadcast %cst_44 : f32 to vector<4x512xf32>
    %136 = arith.maximumf %134, %135 : vector<4x512xf32>
    %137 = tpu.concatenate %67, %136 in 0 : vector<4x512xf32>, vector<4x512xf32> -> vector<8x512xf32>
    %c17_i32_45 = arith.constant 17 : i32
    %138 = tpu.dynamic_rotate %137 by %c17_i32_45 dim 1 : vector<8x512xf32>, i32 -> vector<8x512xf32>
    %139 = vector.extract_strided_slice %0 {offsets = [0, 0], sizes = [1, 512], strides = [1, 1]} : vector<9x512xf32> to vector<1x512xf32>
    %140 = vector.broadcast %139 : vector<1x512xf32> to vector<8x512xf32>
    %141 = arith.mulf %138, %140 : vector<8x512xf32>
    %c16_i32_46 = arith.constant 16 : i32
    %142 = tpu.dynamic_rotate %137 by %c16_i32_46 dim 1 : vector<8x512xf32>, i32 -> vector<8x512xf32>
    %143 = vector.extract_strided_slice %0 {offsets = [1, 0], sizes = [1, 512], strides = [1, 1]} : vector<9x512xf32> to vector<1x512xf32>
    %144 = vector.broadcast %143 : vector<1x512xf32> to vector<8x512xf32>
    %145 = arith.mulf %142, %144 : vector<8x512xf32>
    %c15_i32_47 = arith.constant 15 : i32
    %146 = tpu.dynamic_rotate %137 by %c15_i32_47 dim 1 : vector<8x512xf32>, i32 -> vector<8x512xf32>
    %147 = vector.extract_strided_slice %0 {offsets = [2, 0], sizes = [1, 512], strides = [1, 1]} : vector<9x512xf32> to vector<1x512xf32>
    %148 = vector.broadcast %147 : vector<1x512xf32> to vector<8x512xf32>
    %149 = arith.mulf %146, %148 : vector<8x512xf32>
    %c1_i32_48 = arith.constant 1 : i32
    %150 = tpu.dynamic_rotate %137 by %c1_i32_48 dim 1 : vector<8x512xf32>, i32 -> vector<8x512xf32>
    %151 = vector.extract_strided_slice %0 {offsets = [3, 0], sizes = [1, 512], strides = [1, 1]} : vector<9x512xf32> to vector<1x512xf32>
    %152 = vector.broadcast %151 : vector<1x512xf32> to vector<8x512xf32>
    %153 = arith.mulf %150, %152 : vector<8x512xf32>
    %c511_i32_49 = arith.constant 511 : i32
    %154 = tpu.dynamic_rotate %137 by %c511_i32_49 dim 1 : vector<8x512xf32>, i32 -> vector<8x512xf32>
    %155 = vector.extract_strided_slice %0 {offsets = [5, 0], sizes = [1, 512], strides = [1, 1]} : vector<9x512xf32> to vector<1x512xf32>
    %156 = vector.broadcast %155 : vector<1x512xf32> to vector<8x512xf32>
    %157 = arith.mulf %154, %156 : vector<8x512xf32>
    %c497_i32_50 = arith.constant 497 : i32
    %158 = tpu.dynamic_rotate %137 by %c497_i32_50 dim 1 : vector<8x512xf32>, i32 -> vector<8x512xf32>
    %159 = vector.extract_strided_slice %0 {offsets = [6, 0], sizes = [1, 512], strides = [1, 1]} : vector<9x512xf32> to vector<1x512xf32>
    %160 = vector.broadcast %159 : vector<1x512xf32> to vector<8x512xf32>
    %161 = arith.mulf %158, %160 : vector<8x512xf32>
    %c496_i32_51 = arith.constant 496 : i32
    %162 = tpu.dynamic_rotate %137 by %c496_i32_51 dim 1 : vector<8x512xf32>, i32 -> vector<8x512xf32>
    %163 = vector.extract_strided_slice %0 {offsets = [7, 0], sizes = [1, 512], strides = [1, 1]} : vector<9x512xf32> to vector<1x512xf32>
    %164 = vector.broadcast %163 : vector<1x512xf32> to vector<8x512xf32>
    %165 = arith.mulf %162, %164 : vector<8x512xf32>
    %c495_i32_52 = arith.constant 495 : i32
    %166 = tpu.dynamic_rotate %137 by %c495_i32_52 dim 1 : vector<8x512xf32>, i32 -> vector<8x512xf32>
    %167 = vector.extract_strided_slice %0 {offsets = [8, 0], sizes = [1, 512], strides = [1, 1]} : vector<9x512xf32> to vector<1x512xf32>
    %168 = vector.broadcast %167 : vector<1x512xf32> to vector<8x512xf32>
    %169 = arith.mulf %166, %168 : vector<8x512xf32>
    %170 = tpu.concatenate %141, %145, %149, %153, %137, %157, %161, %165, %169 in 0 : vector<8x512xf32>, vector<8x512xf32>, vector<8x512xf32>, vector<8x512xf32>, vector<8x512xf32>, vector<8x512xf32>, vector<8x512xf32>, vector<8x512xf32>, vector<8x512xf32> -> vector<72x512xf32>
    %c0_53 = arith.constant 0 : index
    %c0_54 = arith.constant 0 : index
    %171 = vector.load %arg13[%c0_53, %c0_54] : memref<4x72xf32, #tpu.memory_space<vmem>>, vector<4x72xf32>
    %cst_55 = arith.constant dense<0.000000e+00> : vector<4x512xf32>
    %172 = tpu.matmul %171, %170, %cst_55 {dimension_numbers = #tpu.dot_dimension_numbers<[1], [0], [0], [1], [0, 0, 1, 1], [], []>} : vector<4x72xf32>, vector<72x512xf32>, vector<4x512xf32> -> vector<4x512xf32>
    %c0_56 = arith.constant 0 : index
    %c0_57 = arith.constant 0 : index
    %173 = vector.load %arg14[%c0_56, %c0_57] : memref<4x1xf32, #tpu.memory_space<vmem>>, vector<4x1xf32>
    %174 = vector.broadcast %173 : vector<4x1xf32> to vector<4x512xf32>
    %175 = arith.addf %172, %174 : vector<4x512xf32>
    %cst_58 = arith.constant dense<0.000000e+00> : vector<4xf32>
    %176 = vector.multi_reduction <add>, %175, %cst_58 [1] : vector<4x512xf32> to vector<4xf32>
    %177 = vector.shape_cast %176 : vector<4xf32> to vector<4x1xf32>
    %cst_59 = arith.constant 5.120000e+02 : f32
    %178 = vector.broadcast %cst_59 : f32 to vector<4x1xf32>
    %179 = arith.divf %177, %178 : vector<4x1xf32>
    %180 = vector.broadcast %179 : vector<4x1xf32> to vector<4x512xf32>
    %181 = arith.subf %175, %180 : vector<4x512xf32>
    %182 = vector.broadcast %179 : vector<4x1xf32> to vector<4x512xf32>
    %183 = arith.subf %175, %182 : vector<4x512xf32>
    %184 = arith.mulf %181, %183 : vector<4x512xf32>
    %cst_60 = arith.constant dense<0.000000e+00> : vector<4xf32>
    %185 = vector.multi_reduction <add>, %184, %cst_60 [1] : vector<4x512xf32> to vector<4xf32>
    %186 = vector.shape_cast %185 : vector<4xf32> to vector<4x1xf32>
    %cst_61 = arith.constant 5.120000e+02 : f32
    %187 = vector.broadcast %cst_61 : f32 to vector<4x1xf32>
    %188 = arith.divf %186, %187 : vector<4x1xf32>
    %189 = vector.broadcast %179 : vector<4x1xf32> to vector<4x512xf32>
    %190 = arith.subf %175, %189 : vector<4x512xf32>
    %cst_62 = arith.constant 9.99999974E-6 : f32
    %191 = vector.broadcast %cst_62 : f32 to vector<4x1xf32>
    %192 = arith.addf %188, %191 : vector<4x1xf32>
    %193 = math.rsqrt %192 : vector<4x1xf32>
    %194 = vector.broadcast %193 : vector<4x1xf32> to vector<4x512xf32>
    %195 = arith.mulf %190, %194 : vector<4x512xf32>
    %c0_63 = arith.constant 0 : index
    %c0_64 = arith.constant 0 : index
    %196 = vector.load %arg15[%c0_63, %c0_64] : memref<4x1xf32, #tpu.memory_space<vmem>>, vector<4x1xf32>
    %197 = vector.broadcast %196 : vector<4x1xf32> to vector<4x512xf32>
    %198 = arith.mulf %195, %197 : vector<4x512xf32>
    %c0_65 = arith.constant 0 : index
    %c0_66 = arith.constant 0 : index
    %199 = vector.load %arg16[%c0_65, %c0_66] : memref<4x1xf32, #tpu.memory_space<vmem>>, vector<4x1xf32>
    %200 = vector.broadcast %199 : vector<4x1xf32> to vector<4x512xf32>
    %201 = arith.addf %198, %200 : vector<4x512xf32>
    %cst_67 = arith.constant 0.000000e+00 : f32
    %202 = vector.broadcast %cst_67 : f32 to vector<4x512xf32>
    %203 = arith.maximumf %201, %202 : vector<4x512xf32>
    %cst_68 = arith.constant dense<0xFF800000> : vector<512xf32>
    %204 = vector.multi_reduction <maximumf>, %203, %cst_68 [0] : vector<4x512xf32> to vector<512xf32>
    %205 = vector.shape_cast %204 : vector<512xf32> to vector<1x512xf32>
    %cst_69 = arith.constant 0.000000e+00 : f32
    %206 = vector.broadcast %cst_69 : f32 to vector<1x512xf32>
    %207 = arith.subf %206, %205 : vector<1x512xf32>
    %208 = math.exp %207 : vector<1x512xf32>
    %cst_70 = arith.constant 1.000000e+00 : f32
    %209 = vector.broadcast %cst_70 : f32 to vector<1x512xf32>
    %210 = arith.addf %209, %208 : vector<1x512xf32>
    %cst_71 = arith.constant 1.000000e+00 : f32
    %211 = vector.broadcast %cst_71 : f32 to vector<1x512xf32>
    %212 = arith.divf %211, %210 : vector<1x512xf32>
    %213 = vector.broadcast %212 : vector<1x512xf32> to vector<4x512xf32>
    %214 = arith.mulf %203, %213 : vector<4x512xf32>
    %215 = arith.addf %214, %203 : vector<4x512xf32>
    %c17_i32_72 = arith.constant 17 : i32
    %216 = tpu.dynamic_rotate %215 by %c17_i32_72 dim 1 : vector<4x512xf32>, i32 -> vector<4x512xf32>
    %217 = vector.extract_strided_slice %0 {offsets = [0, 0], sizes = [1, 512], strides = [1, 1]} : vector<9x512xf32> to vector<1x512xf32>
    %218 = vector.broadcast %217 : vector<1x512xf32> to vector<4x512xf32>
    %219 = arith.mulf %216, %218 : vector<4x512xf32>
    %c16_i32_73 = arith.constant 16 : i32
    %220 = tpu.dynamic_rotate %215 by %c16_i32_73 dim 1 : vector<4x512xf32>, i32 -> vector<4x512xf32>
    %221 = vector.extract_strided_slice %0 {offsets = [1, 0], sizes = [1, 512], strides = [1, 1]} : vector<9x512xf32> to vector<1x512xf32>
    %222 = vector.broadcast %221 : vector<1x512xf32> to vector<4x512xf32>
    %223 = arith.mulf %220, %222 : vector<4x512xf32>
    %c15_i32_74 = arith.constant 15 : i32
    %224 = tpu.dynamic_rotate %215 by %c15_i32_74 dim 1 : vector<4x512xf32>, i32 -> vector<4x512xf32>
    %225 = vector.extract_strided_slice %0 {offsets = [2, 0], sizes = [1, 512], strides = [1, 1]} : vector<9x512xf32> to vector<1x512xf32>
    %226 = vector.broadcast %225 : vector<1x512xf32> to vector<4x512xf32>
    %227 = arith.mulf %224, %226 : vector<4x512xf32>
    %c1_i32_75 = arith.constant 1 : i32
    %228 = tpu.dynamic_rotate %215 by %c1_i32_75 dim 1 : vector<4x512xf32>, i32 -> vector<4x512xf32>
    %229 = vector.extract_strided_slice %0 {offsets = [3, 0], sizes = [1, 512], strides = [1, 1]} : vector<9x512xf32> to vector<1x512xf32>
    %230 = vector.broadcast %229 : vector<1x512xf32> to vector<4x512xf32>
    %231 = arith.mulf %228, %230 : vector<4x512xf32>
    %c511_i32_76 = arith.constant 511 : i32
    %232 = tpu.dynamic_rotate %215 by %c511_i32_76 dim 1 : vector<4x512xf32>, i32 -> vector<4x512xf32>
    %233 = vector.extract_strided_slice %0 {offsets = [5, 0], sizes = [1, 512], strides = [1, 1]} : vector<9x512xf32> to vector<1x512xf32>
    %234 = vector.broadcast %233 : vector<1x512xf32> to vector<4x512xf32>
    %235 = arith.mulf %232, %234 : vector<4x512xf32>
    %c497_i32_77 = arith.constant 497 : i32
    %236 = tpu.dynamic_rotate %215 by %c497_i32_77 dim 1 : vector<4x512xf32>, i32 -> vector<4x512xf32>
    %237 = vector.extract_strided_slice %0 {offsets = [6, 0], sizes = [1, 512], strides = [1, 1]} : vector<9x512xf32> to vector<1x512xf32>
    %238 = vector.broadcast %237 : vector<1x512xf32> to vector<4x512xf32>
    %239 = arith.mulf %236, %238 : vector<4x512xf32>
    %c496_i32_78 = arith.constant 496 : i32
    %240 = tpu.dynamic_rotate %215 by %c496_i32_78 dim 1 : vector<4x512xf32>, i32 -> vector<4x512xf32>
    %241 = vector.extract_strided_slice %0 {offsets = [7, 0], sizes = [1, 512], strides = [1, 1]} : vector<9x512xf32> to vector<1x512xf32>
    %242 = vector.broadcast %241 : vector<1x512xf32> to vector<4x512xf32>
    %243 = arith.mulf %240, %242 : vector<4x512xf32>
    %c495_i32_79 = arith.constant 495 : i32
    %244 = tpu.dynamic_rotate %215 by %c495_i32_79 dim 1 : vector<4x512xf32>, i32 -> vector<4x512xf32>
    %245 = vector.extract_strided_slice %0 {offsets = [8, 0], sizes = [1, 512], strides = [1, 1]} : vector<9x512xf32> to vector<1x512xf32>
    %246 = vector.broadcast %245 : vector<1x512xf32> to vector<4x512xf32>
    %247 = arith.mulf %244, %246 : vector<4x512xf32>
    %248 = tpu.concatenate %219, %223, %227, %231, %215, %235, %239, %243, %247 in 0 : vector<4x512xf32>, vector<4x512xf32>, vector<4x512xf32>, vector<4x512xf32>, vector<4x512xf32>, vector<4x512xf32>, vector<4x512xf32>, vector<4x512xf32>, vector<4x512xf32> -> vector<36x512xf32>
    %c0_80 = arith.constant 0 : index
    %c0_81 = arith.constant 0 : index
    %249 = vector.load %arg17[%c0_80, %c0_81] : memref<4x36xf32, #tpu.memory_space<vmem>>, vector<4x36xf32>
    %cst_82 = arith.constant dense<0.000000e+00> : vector<4x512xf32>
    %250 = tpu.matmul %249, %248, %cst_82 {dimension_numbers = #tpu.dot_dimension_numbers<[1], [0], [0], [1], [0, 0, 1, 1], [], []>} : vector<4x36xf32>, vector<36x512xf32>, vector<4x512xf32> -> vector<4x512xf32>
    %c0_83 = arith.constant 0 : index
    %c0_84 = arith.constant 0 : index
    %251 = vector.load %arg18[%c0_83, %c0_84] : memref<4x1xf32, #tpu.memory_space<vmem>>, vector<4x1xf32>
    %252 = vector.broadcast %251 : vector<4x1xf32> to vector<4x512xf32>
    %253 = arith.addf %250, %252 : vector<4x512xf32>
    %cst_85 = arith.constant dense<0.000000e+00> : vector<4xf32>
    %254 = vector.multi_reduction <add>, %253, %cst_85 [1] : vector<4x512xf32> to vector<4xf32>
    %255 = vector.shape_cast %254 : vector<4xf32> to vector<4x1xf32>
    %cst_86 = arith.constant 5.120000e+02 : f32
    %256 = vector.broadcast %cst_86 : f32 to vector<4x1xf32>
    %257 = arith.divf %255, %256 : vector<4x1xf32>
    %258 = vector.broadcast %257 : vector<4x1xf32> to vector<4x512xf32>
    %259 = arith.subf %253, %258 : vector<4x512xf32>
    %260 = vector.broadcast %257 : vector<4x1xf32> to vector<4x512xf32>
    %261 = arith.subf %253, %260 : vector<4x512xf32>
    %262 = arith.mulf %259, %261 : vector<4x512xf32>
    %cst_87 = arith.constant dense<0.000000e+00> : vector<4xf32>
    %263 = vector.multi_reduction <add>, %262, %cst_87 [1] : vector<4x512xf32> to vector<4xf32>
    %264 = vector.shape_cast %263 : vector<4xf32> to vector<4x1xf32>
    %cst_88 = arith.constant 5.120000e+02 : f32
    %265 = vector.broadcast %cst_88 : f32 to vector<4x1xf32>
    %266 = arith.divf %264, %265 : vector<4x1xf32>
    %267 = vector.broadcast %257 : vector<4x1xf32> to vector<4x512xf32>
    %268 = arith.subf %253, %267 : vector<4x512xf32>
    %cst_89 = arith.constant 9.99999974E-6 : f32
    %269 = vector.broadcast %cst_89 : f32 to vector<4x1xf32>
    %270 = arith.addf %266, %269 : vector<4x1xf32>
    %271 = math.rsqrt %270 : vector<4x1xf32>
    %272 = vector.broadcast %271 : vector<4x1xf32> to vector<4x512xf32>
    %273 = arith.mulf %268, %272 : vector<4x512xf32>
    %c0_90 = arith.constant 0 : index
    %c0_91 = arith.constant 0 : index
    %274 = vector.load %arg19[%c0_90, %c0_91] : memref<4x1xf32, #tpu.memory_space<vmem>>, vector<4x1xf32>
    %275 = vector.broadcast %274 : vector<4x1xf32> to vector<4x512xf32>
    %276 = arith.mulf %273, %275 : vector<4x512xf32>
    %c0_92 = arith.constant 0 : index
    %c0_93 = arith.constant 0 : index
    %277 = vector.load %arg20[%c0_92, %c0_93] : memref<4x1xf32, #tpu.memory_space<vmem>>, vector<4x1xf32>
    %278 = vector.broadcast %277 : vector<4x1xf32> to vector<4x512xf32>
    %279 = arith.addf %276, %278 : vector<4x512xf32>
    %cst_94 = arith.constant 0.000000e+00 : f32
    %280 = vector.broadcast %cst_94 : f32 to vector<4x512xf32>
    %281 = arith.maximumf %279, %280 : vector<4x512xf32>
    %c0_95 = arith.constant 0 : index
    %c0_96 = arith.constant 0 : index
    %282 = vector.load %arg21[%c0_95, %c0_96] : memref<4x512xf32, #tpu.memory_space<vmem>>, vector<4x512xf32>
    tpu.vector_store %arg21[%c0_95, %c0_96], %281 {strides = array<i32>} : memref<4x512xf32, #tpu.memory_space<vmem>>, vector<4x512xf32>,
    return
  }
  func.func @transform_0(%arg0: i32) -> (i32, i32) {
    %c0_i32 = arith.constant 0 : i32
    %c0_i32_0 = arith.constant 0 : i32
    %c0_i32_1 = arith.constant 0 : i32
    return %c0_i32, %c0_i32_0 : i32, i32
  }
  func.func @transform_1(%arg0: i32) -> (i32, i32) {
    %c0_i32 = arith.constant 0 : i32
    %c0_i32_0 = arith.constant 0 : i32
    %c0_i32_1 = arith.constant 0 : i32
    return %c0_i32, %c0_i32_0 : i32, i32
  }
  func.func @transform_2(%arg0: i32) -> (i32, i32) {
    %c0_i32 = arith.constant 0 : i32
    %c0_i32_0 = arith.constant 0 : i32
    %c0_i32_1 = arith.constant 0 : i32
    return %c0_i32, %c0_i32_0 : i32, i32
  }
  func.func @transform_3(%arg0: i32) -> (i32, i32) {
    %c0_i32 = arith.constant 0 : i32
    %c0_i32_0 = arith.constant 0 : i32
    %c0_i32_1 = arith.constant 0 : i32
    return %c0_i32, %c0_i32_0 : i32, i32
  }
  func.func @transform_4(%arg0: i32) -> (i32, i32) {
    %c0_i32 = arith.constant 0 : i32
    %c0_i32_0 = arith.constant 0 : i32
    %c0_i32_1 = arith.constant 0 : i32
    return %c0_i32, %c0_i32_0 : i32, i32
  }
  func.func @transform_5(%arg0: i32) -> (i32, i32) {
    %c0_i32 = arith.constant 0 : i32
    %c0_i32_0 = arith.constant 0 : i32
    %c0_i32_1 = arith.constant 0 : i32
    return %c0_i32, %c0_i32_0 : i32, i32
  }
  func.func @transform_6(%arg0: i32) -> (i32, i32) {
    %c0_i32 = arith.constant 0 : i32
    %c0_i32_0 = arith.constant 0 : i32
    %c0_i32_1 = arith.constant 0 : i32
    return %c0_i32, %c0_i32_0 : i32, i32
  }
  func.func @transform_7(%arg0: i32) -> (i32, i32) {
    %c0_i32 = arith.constant 0 : i32
    %c0_i32_0 = arith.constant 0 : i32
    %c0_i32_1 = arith.constant 0 : i32
    return %c0_i32, %c0_i32_0 : i32, i32
  }
  func.func @transform_8(%arg0: i32) -> (i32, i32) {
    %c0_i32 = arith.constant 0 : i32
    %c0_i32_0 = arith.constant 0 : i32
    %c0_i32_1 = arith.constant 0 : i32
    return %c0_i32, %c0_i32_0 : i32, i32
  }
  func.func @transform_9(%arg0: i32) -> (i32, i32) {
    %c0_i32 = arith.constant 0 : i32
    %c0_i32_0 = arith.constant 0 : i32
    %c0_i32_1 = arith.constant 0 : i32
    return %c0_i32, %c0_i32_0 : i32, i32
  }
  func.func @transform_10(%arg0: i32) -> (i32, i32) {
    %c0_i32 = arith.constant 0 : i32
    %c0_i32_0 = arith.constant 0 : i32
    %c0_i32_1 = arith.constant 0 : i32
    return %c0_i32, %c0_i32_0 : i32, i32
  }
  func.func @transform_11(%arg0: i32) -> (i32, i32) {
    %c0_i32 = arith.constant 0 : i32
    %c0_i32_0 = arith.constant 0 : i32
    %c0_i32_1 = arith.constant 0 : i32
    return %c0_i32, %c0_i32_0 : i32, i32
  }
  func.func @transform_12(%arg0: i32) -> (i32, i32) {
    %c0_i32 = arith.constant 0 : i32
    %c0_i32_0 = arith.constant 0 : i32
    %c0_i32_1 = arith.constant 0 : i32
    return %c0_i32, %c0_i32_0 : i32, i32
  }
  func.func @transform_13(%arg0: i32) -> (i32, i32) {
    %c0_i32 = arith.constant 0 : i32
    %c0_i32_0 = arith.constant 0 : i32
    %c0_i32_1 = arith.constant 0 : i32
    return %c0_i32, %c0_i32_0 : i32, i32
  }
  func.func @transform_14(%arg0: i32) -> (i32, i32) {
    %c0_i32 = arith.constant 0 : i32
    %c0_i32_0 = arith.constant 0 : i32
    %c0_i32_1 = arith.constant 0 : i32
    return %c0_i32, %c0_i32_0 : i32, i32
  }
  func.func @transform_15(%arg0: i32) -> (i32, i32) {
    %c0_i32 = arith.constant 0 : i32
    %c0_i32_0 = arith.constant 0 : i32
    %c0_i32_1 = arith.constant 0 : i32
    return %c0_i32, %c0_i32_0 : i32, i32
  }
  func.func @transform_16(%arg0: i32) -> (i32, i32) {
    %c0_i32 = arith.constant 0 : i32
    %c0_i32_0 = arith.constant 0 : i32
    %c0_i32_1 = arith.constant 0 : i32
    return %c0_i32, %c0_i32_0 : i32, i32
  }
  func.func @transform_17(%arg0: i32) -> (i32, i32) {
    %c0_i32 = arith.constant 0 : i32
    %c0_i32_0 = arith.constant 0 : i32
    %c0_i32_1 = arith.constant 0 : i32
    return %c0_i32, %c0_i32_0 : i32, i32
  }
  func.func @transform_18(%arg0: i32) -> (i32, i32) {
    %c0_i32 = arith.constant 0 : i32
    %c0_i32_0 = arith.constant 0 : i32
    %c0_i32_1 = arith.constant 0 : i32
    return %c0_i32, %c0_i32_0 : i32, i32
  }
  func.func @transform_19(%arg0: i32) -> (i32, i32) {
    %c0_i32 = arith.constant 0 : i32
    %c0_i32_0 = arith.constant 0 : i32
    %c0_i32_1 = arith.constant 0 : i32
    return %c0_i32, %c0_i32_0 : i32, i32
  }
  func.func @transform_20(%arg0: i32) -> (i32, i32) {
    %c0_i32 = arith.constant 0 : i32
    %c0_i32_0 = arith.constant 0 : i32
    %c0_i32_1 = arith.constant 0 : i32
    return %c0_i32, %c0_i32_0 : i32, i32
  }
}

</mosaic_0001>

<llo_original>
// kernel: edge_forward.1
$region0: #{edge_forward.1}
  #allocation0 [shape = 'u32[]', space=smem, size = 0x4, offset = 0x4, fixed_abs, tag = 'smem constant byte address 0x4 - core index']
  #allocation1 [shape = 'u32[144,128]{1,0:T(1,128)}', space=vmem, size = 0x12000, scoped, tag = 'internal scratch']
  %s0 = inlined_call_operand.vmem [shape: f32[4,512], index: 0, kind: input, shape index: {}]
  %s1 = inlined_call_operand.vmem [shape: f32[4,128], index: 1, kind: input, shape index: {}]
  %s2 = inlined_call_operand.vmem [shape: f32[128,512], index: 2, kind: input, shape index: {}]
  %s3 = inlined_call_operand.vmem [shape: f32[9,512], index: 3, kind: input, shape index: {}]
  %s4 = inlined_call_operand.vmem [shape: f32[4,36], index: 4, kind: input, shape index: {}]
  %s5 = inlined_call_operand.vmem [shape: f32[4,1], index: 5, kind: input, shape index: {}]
  %s6 = inlined_call_operand.vmem [shape: f32[4,1], index: 6, kind: input, shape index: {}]
  %s7 = inlined_call_operand.vmem [shape: f32[4,1], index: 7, kind: input, shape index: {}]
  %s8 = inlined_call_operand.vmem [shape: f32[4,36], index: 8, kind: input, shape index: {}]
  %s9 = inlined_call_operand.vmem [shape: f32[4,1], index: 9, kind: input, shape index: {}]
  %s10 = inlined_call_operand.vmem [shape: f32[4,1], index: 10, kind: input, shape index: {}]
  %s11 = inlined_call_operand.vmem [shape: f32[4,1], index: 11, kind: input, shape index: {}]
  %s12 = inlined_call_operand.vmem [shape: f32[4,72], index: 12, kind: input, shape index: {}]
  %s13 = inlined_call_operand.vmem [shape: f32[4,1], index: 13, kind: input, shape index: {}]
  %s14 = inlined_call_operand.vmem [shape: f32[4,1], index: 14, kind: input, shape index: {}]
  %s15 = inlined_call_operand.vmem [shape: f32[4,1], index: 15, kind: input, shape index: {}]
  %s16 = inlined_call_operand.vmem [shape: f32[4,36], index: 16, kind: input, shape index: {}]
  %s17 = inlined_call_operand.vmem [shape: f32[4,1], index: 17, kind: input, shape index: {}]
  %s18 = inlined_call_operand.vmem [shape: f32[4,1], index: 18, kind: input, shape index: {}]
  %s19 = inlined_call_operand.vmem [shape: f32[4,1], index: 19, kind: input, shape index: {}]
  %s20 = inlined_call_operand.vmem [shape: f32[4,512], index: 20, kind: output, shape index: {}]
  %s21 = sld [smem:[#allocation0]]
  $region90: #{edge_forward.1} parent=0
    _
  %s23 = ssub.s32 1, %s21
  %s24 = scalar_select 0, %s23, %s21
  // Predicated region
  $region2: #{edge_forward.1} parent=0 // pred_check
    _
  $region3: #{edge_forward.1} parent=0 // pred_check_branch
    %26 = sbr.rel (0) target = $region5
  $region4: #{edge_forward.1} parent=0 // pred_region
    _
  $region5: #{edge_forward.1} parent=0 // pred_fallthru
    _
  // Predicated region
  $region6: #{edge_forward.1} parent=0 // pred_check
    _
  $region7: #{edge_forward.1} parent=0 // pred_check_branch
    %28 = sbr.rel (0) target = $region9
  $region8: #{edge_forward.1} parent=0 // pred_region
    _
  $region9: #{edge_forward.1} parent=0 // pred_fallthru
    _
  // Predicated region
  $region10: #{edge_forward.1} parent=0 // pred_check
    _
  $region11: #{edge_forward.1} parent=0 // pred_check_branch
    %30 = sbr.rel (0) target = $region13
  $region12: #{edge_forward.1} parent=0 // pred_region
    _
  $region13: #{edge_forward.1} parent=0 // pred_fallthru
    _
  // Predicated region
  $region14: #{edge_forward.1} parent=0 // pred_check
    _
  $region15: #{edge_forward.1} parent=0 // pred_check_branch
    %32 = sbr.rel (0) target = $region17
  $region16: #{edge_forward.1} parent=0 // pred_region
    _
  $region17: #{edge_forward.1} parent=0 // pred_fallthru
    _
  // Predicated region
  $region18: #{edge_forward.1} parent=0 // pred_check
    _
  $region19: #{edge_forward.1} parent=0 // pred_check_branch
    %34 = sbr.rel (0) target = $region21
  $region20: #{edge_forward.1} parent=0 // pred_region
    _
  $region21: #{edge_forward.1} parent=0 // pred_fallthru
    _
  // Predicated region
  $region22: #{edge_forward.1} parent=0 // pred_check
    _
  $region23: #{edge_forward.1} parent=0 // pred_check_branch
    %36 = sbr.rel (0) target = $region25
  $region24: #{edge_forward.1} parent=0 // pred_region
    _
  $region25: #{edge_forward.1} parent=0 // pred_fallthru
    _
  // Predicated region
  $region26: #{edge_forward.1} parent=0 // pred_check
    _
  $region27: #{edge_forward.1} parent=0 // pred_check_branch
    %38 = sbr.rel (0) target = $region29
  $region28: #{edge_forward.1} parent=0 // pred_region
    _
  $region29: #{edge_forward.1} parent=0 // pred_fallthru
    _
  // Predicated region
  $region30: #{edge_forward.1} parent=0 // pred_check
    _
  $region31: #{edge_forward.1} parent=0 // pred_check_branch
    %40 = sbr.rel (0) target = $region33
  $region32: #{edge_forward.1} parent=0 // pred_region
    _
  $region33: #{edge_forward.1} parent=0 // pred_fallthru
    _
  // Predicated region
  $region34: #{edge_forward.1} parent=0 // pred_check
    _
  $region35: #{edge_forward.1} parent=0 // pred_check_branch
    %42 = sbr.rel (0) target = $region37
  $region36: #{edge_forward.1} parent=0 // pred_region
    _
  $region37: #{edge_forward.1} parent=0 // pred_fallthru
    _
  // Predicated region
  $region38: #{edge_forward.1} parent=0 // pred_check
    _
  $region39: #{edge_forward.1} parent=0 // pred_check_branch
    %44 = sbr.rel (0) target = $region41
  $region40: #{edge_forward.1} parent=0 // pred_region
    _
  $region41: #{edge_forward.1} parent=0 // pred_fallthru
    _
  // Predicated region
  $region42: #{edge_forward.1} parent=0 // pred_check
    _
  $region43: #{edge_forward.1} parent=0 // pred_check_branch
    %46 = sbr.rel (0) target = $region45
  $region44: #{edge_forward.1} parent=0 // pred_region
    _
  $region45: #{edge_forward.1} parent=0 // pred_fallthru
    _
  // Predicated region
  $region46: #{edge_forward.1} parent=0 // pred_check
    _
  $region47: #{edge_forward.1} parent=0 // pred_check_branch
    %48 = sbr.rel (0) target = $region49
  $region48: #{edge_forward.1} parent=0 // pred_region
    _
  $region49: #{edge_forward.1} parent=0 // pred_fallthru
    _
  // Predicated region
  $region50: #{edge_forward.1} parent=0 // pred_check
    _
  $region51: #{edge_forward.1} parent=0 // pred_check_branch
    %50 = sbr.rel (0) target = $region53
  $region52: #{edge_forward.1} parent=0 // pred_region
    _
  $region53: #{edge_forward.1} parent=0 // pred_fallthru
    _
  // Predicated region
  $region54: #{edge_forward.1} parent=0 // pred_check
    _
  $region55: #{edge_forward.1} parent=0 // pred_check_branch
    %52 = sbr.rel (0) target = $region57
  $region56: #{edge_forward.1} parent=0 // pred_region
    _
  $region57: #{edge_forward.1} parent=0 // pred_fallthru
    _
  // Predicated region
  $region58: #{edge_forward.1} parent=0 // pred_check
    _
  $region59: #{edge_forward.1} parent=0 // pred_check_branch
    %54 = sbr.rel (0) target = $region61
  $region60: #{edge_forward.1} parent=0 // pred_region
    _
  $region61: #{edge_forward.1} parent=0 // pred_fallthru
    _
  // Predicated region
  $region62: #{edge_forward.1} parent=0 // pred_check
    _
  $region63: #{edge_forward.1} parent=0 // pred_check_branch
    %56 = sbr.rel (0) target = $region65
  $region64: #{edge_forward.1} parent=0 // pred_region
    _
  $region65: #{edge_forward.1} parent=0 // pred_fallthru
    _
  // Predicated region
  $region66: #{edge_forward.1} parent=0 // pred_check
    _
  $region67: #{edge_forward.1} parent=0 // pred_check_branch
    %58 = sbr.rel (0) target = $region69
  $region68: #{edge_forward.1} parent=0 // pred_region
    _
  $region69: #{edge_forward.1} parent=0 // pred_fallthru
    _
  // Predicated region
  $region70: #{edge_forward.1} parent=0 // pred_check
    _
  $region71: #{edge_forward.1} parent=0 // pred_check_branch
    %60 = sbr.rel (0) target = $region73
  $region72: #{edge_forward.1} parent=0 // pred_region
    _
  $region73: #{edge_forward.1} parent=0 // pred_fallthru
    _
  // Predicated region
  $region74: #{edge_forward.1} parent=0 // pred_check
    _
  $region75: #{edge_forward.1} parent=0 // pred_check_branch
    %62 = sbr.rel (0) target = $region77
  $region76: #{edge_forward.1} parent=0 // pred_region
    _
  $region77: #{edge_forward.1} parent=0 // pred_fallthru
    _
  // Predicated region
  $region78: #{edge_forward.1} parent=0 // pred_check
    _
  $region79: #{edge_forward.1} parent=0 // pred_check_branch
    %64 = sbr.rel (0) target = $region81
  $region80: #{edge_forward.1} parent=0 // pred_region
    _
  $region81: #{edge_forward.1} parent=0 // pred_fallthru
    _
  %v65 = vld [vmem:[%s3] sm:$0xff]
  %v66 = vld [vmem:[%s3 + $0x8] sm:$0xff]
  %v67 = vld [vmem:[%s3 + $0x10] sm:$0xff]
  %v68 = vld [vmem:[%s3 + $0x18] sm:$0xff]
  %v69 = vld [vmem:[%s3 + $0x20] sm:$0x1]
  %v70 = vld [vmem:[%s3 + $0x28] sm:$0x1]
  %v71 = vld [vmem:[%s3 + $0x30] sm:$0x1]
  %v72 = vld [vmem:[%s3 + $0x38] sm:$0x1]
  %v73 = vld [vmem:[%s0] sm:$0xff]
  %v74 = vld [vmem:[%s0 + $0x8] sm:$0xff]
  %v77 = vcombine.high %v73, %v73
  %v78 = vcombine.high %v74, %v74
  %81 = vrot.lane.b32.xlu0 %v73, 17
  %v82 = vpop.permute.xlu0 %81
  %83 = vrot.lane.b32.xlu0 %v77, 17
  %v84 = vpop.permute.xlu0 %83
  %85 = vrot.lane.b32.xlu0 %v74, 17
  %v86 = vpop.permute.xlu0 %85
  %87 = vrot.lane.b32.xlu0 %v78, 17
  %v88 = vpop.permute.xlu0 %87
  %v89 = vlaneseq
  %v90 = vand.u32 %v89, 127
  %vm91 = vcmp.lt.s32.totalorder %v90, 17
  %v92 = vsel %vm91, %v86, %v88
  %v93 = vsel %vm91, %v84, %v86
  %v94 = vsel %vm91, %v82, %v84
  %v95 = vsel %vm91, %v88, %v82
  %v96 = vlaneseq
  %v97 = vshrl.u32 %v96, 7
  %v98 = vsub.s32 0, %v97
  %v99 = vrot.slane %v65, %v98
  %v100 = vlaneseq
  %v101 = vshrl.u32 %v100, 7
  %v102 = vsub.s32 0, %v101
  %v103 = vrot.slane %v66, %v102
  %v104 = vlaneseq
  %v105 = vshrl.u32 %v104, 7
  %v106 = vsub.s32 0, %v105
  %v107 = vrot.slane %v67, %v106
  %v108 = vlaneseq
  %v109 = vshrl.u32 %v108, 7
  %v110 = vsub.s32 0, %v109
  %v111 = vrot.slane %v68, %v110
  %v112 = vmul.f32 %v95, %v99
  %v113 = vmul.f32 %v94, %v103
  %v114 = vmul.f32 %v93, %v107
  %v115 = vmul.f32 %v92, %v111
  %116 = vrot.lane.b32.xlu0 %v73, 16
  %v117 = vpop.permute.xlu0 %116
  %118 = vrot.lane.b32.xlu0 %v77, 16
  %v119 = vpop.permute.xlu0 %118
  %120 = vrot.lane.b32.xlu0 %v74, 16
  %v121 = vpop.permute.xlu0 %120
  %122 = vrot.lane.b32.xlu0 %v78, 16
  %v123 = vpop.permute.xlu0 %122
  %vm124 = vcmp.lt.s32.totalorder %v90, 16
  %v125 = vsel %vm124, %v121, %v123
  %v126 = vsel %vm124, %v119, %v121
  %v127 = vsel %vm124, %v117, %v119
  %v128 = vsel %vm124, %v123, %v117
  %v129 = vlaneseq
  %v130 = vshrl.u32 %v129, 7
  %v131 = vsub.s32 1, %v130
  %v132 = vrot.slane %v65, %v131
  %v133 = vlaneseq
  %v134 = vshrl.u32 %v133, 7
  %v135 = vsub.s32 1, %v134
  %v136 = vrot.slane %v66, %v135
  %v137 = vlaneseq
  %v138 = vshrl.u32 %v137, 7
  %v139 = vsub.s32 1, %v138
  %v140 = vrot.slane %v67, %v139
  %v141 = vlaneseq
  %v142 = vshrl.u32 %v141, 7
  %v143 = vsub.s32 1, %v142
  %v144 = vrot.slane %v68, %v143
  %v145 = vmul.f32 %v128, %v132
  %v146 = vmul.f32 %v127, %v136
  %v147 = vmul.f32 %v126, %v140
  %v148 = vmul.f32 %v125, %v144
  %149 = vrot.lane.b32.xlu0 %v73, 15
  %v150 = vpop.permute.xlu0 %149
  %151 = vrot.lane.b32.xlu0 %v77, 15
  %v152 = vpop.permute.xlu0 %151
  %153 = vrot.lane.b32.xlu0 %v74, 15
  %v154 = vpop.permute.xlu0 %153
  %155 = vrot.lane.b32.xlu0 %v78, 15
  %v156 = vpop.permute.xlu0 %155
  %vm157 = vcmp.lt.s32.totalorder %v90, 15
  %v158 = vsel %vm157, %v154, %v156
  %v159 = vsel %vm157, %v152, %v154
  %v160 = vsel %vm157, %v150, %v152
  %v161 = vsel %vm157, %v156, %v150
  %v162 = vlaneseq
  %v163 = vshrl.u32 %v162, 7
  %v164 = vsub.s32 2, %v163
  %v165 = vrot.slane %v65, %v164
  %v166 = vlaneseq
  %v167 = vshrl.u32 %v166, 7
  %v168 = vsub.s32 2, %v167
  %v169 = vrot.slane %v66, %v168
  %v170 = vlaneseq
  %v171 = vshrl.u32 %v170, 7
  %v172 = vsub.s32 2, %v171
  %v173 = vrot.slane %v67, %v172
  %v174 = vlaneseq
  %v175 = vshrl.u32 %v174, 7
  %v176 = vsub.s32 2, %v175
  %v177 = vrot.slane %v68, %v176
  %v178 = vmul.f32 %v161, %v165
  %v179 = vmul.f32 %v160, %v169
  %v180 = vmul.f32 %v159, %v173
  %v181 = vmul.f32 %v158, %v177
  %182 = vrot.lane.b32.xlu0 %v73, 1
  %v183 = vpop.permute.xlu0 %182
  %184 = vrot.lane.b32.xlu0 %v77, 1
  %v185 = vpop.permute.xlu0 %184
  %186 = vrot.lane.b32.xlu0 %v74, 1
  %v187 = vpop.permute.xlu0 %186
  %188 = vrot.lane.b32.xlu0 %v78, 1
  %v189 = vpop.permute.xlu0 %188
  %vm190 = vcmp.lt.s32.totalorder %v90, 1
  %v191 = vsel %vm190, %v187, %v189
  %v192 = vsel %vm190, %v185, %v187
  %v193 = vsel %vm190, %v183, %v185
  %v194 = vsel %vm190, %v189, %v183
  %v195 = vlaneseq
  %v196 = vshrl.u32 %v195, 7
  %v197 = vsub.s32 3, %v196
  %v198 = vrot.slane %v65, %v197
  %v199 = vlaneseq
  %v200 = vshrl.u32 %v199, 7
  %v201 = vsub.s32 3, %v200
  %v202 = vrot.slane %v66, %v201
  %v203 = vlaneseq
  %v204 = vshrl.u32 %v203, 7
  %v205 = vsub.s32 3, %v204
  %v206 = vrot.slane %v67, %v205
  %v207 = vlaneseq
  %v208 = vshrl.u32 %v207, 7
  %v209 = vsub.s32 3, %v208
  %v210 = vrot.slane %v68, %v209
  %v211 = vmul.f32 %v194, %v198
  %v212 = vmul.f32 %v193, %v202
  %v213 = vmul.f32 %v192, %v206
  %v214 = vmul.f32 %v191, %v210
  %215 = vrot.lane.b32.xlu0 %v73, 127
  %v216 = vpop.permute.xlu0 %215
  %217 = vrot.lane.b32.xlu0 %v77, 127
  %v218 = vpop.permute.xlu0 %217
  %219 = vrot.lane.b32.xlu0 %v74, 127
  %v220 = vpop.permute.xlu0 %219
  %221 = vrot.lane.b32.xlu0 %v78, 127
  %v222 = vpop.permute.xlu0 %221
  %vm223 = vcmp.lt.s32.totalorder %v90, 127
  %v224 = vsel %vm223, %v220, %v222
  %v225 = vsel %vm223, %v218, %v220
  %v226 = vsel %vm223, %v216, %v218
  %v227 = vsel %vm223, %v222, %v216
  %v228 = vlaneseq
  %v229 = vshrl.u32 %v228, 7
  %v230 = vsub.s32 5, %v229
  %v231 = vrot.slane %v65, %v230
  %v232 = vlaneseq
  %v233 = vshrl.u32 %v232, 7
  %v234 = vsub.s32 5, %v233
  %v235 = vrot.slane %v66, %v234
  %v236 = vlaneseq
  %v237 = vshrl.u32 %v236, 7
  %v238 = vsub.s32 5, %v237
  %v239 = vrot.slane %v67, %v238
  %v240 = vlaneseq
  %v241 = vshrl.u32 %v240, 7
  %v242 = vsub.s32 5, %v241
  %v243 = vrot.slane %v68, %v242
  %v244 = vmul.f32 %v226, %v231
  %v245 = vmul.f32 %v225, %v235
  %v246 = vmul.f32 %v224, %v239
  %v247 = vmul.f32 %v227, %v243
  %248 = vrot.lane.b32.xlu0 %v73, 113
  %v249 = vpop.permute.xlu0 %248
  %250 = vrot.lane.b32.xlu0 %v77, 113
  %v251 = vpop.permute.xlu0 %250
  %252 = vrot.lane.b32.xlu0 %v74, 113
  %v253 = vpop.permute.xlu0 %252
  %254 = vrot.lane.b32.xlu0 %v78, 113
  %v255 = vpop.permute.xlu0 %254
  %vm256 = vcmp.lt.s32.totalorder %v90, 113
  %v257 = vsel %vm256, %v253, %v255
  %v258 = vsel %vm256, %v251, %v253
  %v259 = vsel %vm256, %v249, %v251
  %v260 = vsel %vm256, %v255, %v249
  %v261 = vlaneseq
  %v262 = vshrl.u32 %v261, 7
  %v263 = vsub.s32 6, %v262
  %v264 = vrot.slane %v65, %v263
  %v265 = vlaneseq
  %v266 = vshrl.u32 %v265, 7
  %v267 = vsub.s32 6, %v266
  %v268 = vrot.slane %v66, %v267
  %v269 = vlaneseq
  %v270 = vshrl.u32 %v269, 7
  %v271 = vsub.s32 6, %v270
  %v272 = vrot.slane %v67, %v271
  %v273 = vlaneseq
  %v274 = vshrl.u32 %v273, 7
  %v275 = vsub.s32 6, %v274
  %v276 = vrot.slane %v68, %v275
  %v277 = vmul.f32 %v259, %v264
  %v278 = vmul.f32 %v258, %v268
  %v279 = vmul.f32 %v257, %v272
  %v280 = vmul.f32 %v260, %v276
  %281 = vrot.lane.b32.xlu0 %v73, 112
  %v282 = vpop.permute.xlu0 %281
  %283 = vrot.lane.b32.xlu0 %v77, 112
  %v284 = vpop.permute.xlu0 %283
  %285 = vrot.lane.b32.xlu0 %v74, 112
  %v286 = vpop.permute.xlu0 %285
  %287 = vrot.lane.b32.xlu0 %v78, 112
  %v288 = vpop.permute.xlu0 %287
  %vm289 = vcmp.lt.s32.totalorder %v90, 112
  %v290 = vsel %vm289, %v286, %v288
  %v291 = vsel %vm289, %v284, %v286
  %v292 = vsel %vm289, %v282, %v284
  %v293 = vsel %vm289, %v288, %v282
  %v294 = vlaneseq
  %v295 = vshrl.u32 %v294, 7
  %v296 = vsub.s32 7, %v295
  %v297 = vrot.slane %v65, %v296
  %v298 = vlaneseq
  %v299 = vshrl.u32 %v298, 7
  %v300 = vsub.s32 7, %v299
  %v301 = vrot.slane %v66, %v300
  %v302 = vlaneseq
  %v303 = vshrl.u32 %v302, 7
  %v304 = vsub.s32 7, %v303
  %v305 = vrot.slane %v67, %v304
  %v306 = vlaneseq
  %v307 = vshrl.u32 %v306, 7
  %v308 = vsub.s32 7, %v307
  %v309 = vrot.slane %v68, %v308
  %v310 = vmul.f32 %v292, %v297
  %v311 = vmul.f32 %v291, %v301
  %v312 = vmul.f32 %v290, %v305
  %v313 = vmul.f32 %v293, %v309
  %314 = vrot.lane.b32.xlu0 %v73, 111
  %v315 = vpop.permute.xlu0 %314
  %316 = vrot.lane.b32.xlu0 %v77, 111
  %v317 = vpop.permute.xlu0 %316
  %318 = vrot.lane.b32.xlu0 %v74, 111
  %v319 = vpop.permute.xlu0 %318
  %320 = vrot.lane.b32.xlu0 %v78, 111
  %v321 = vpop.permute.xlu0 %320
  %vm322 = vcmp.lt.s32.totalorder %v90, 111
  %v323 = vsel %vm322, %v319, %v321
  %v324 = vsel %vm322, %v317, %v319
  %v325 = vsel %vm322, %v315, %v317
  %v326 = vsel %vm322, %v321, %v315
  %v327 = vlaneseq
  %v328 = vshrl.u32 %v327, 7
  %v329 = vsub.s32 0, %v328
  %v330 = vrot.slane %v69, %v329
  %v331 = vlaneseq
  %v332 = vshrl.u32 %v331, 7
  %v333 = vsub.s32 0, %v332
  %v334 = vrot.slane %v70, %v333
  %v335 = vlaneseq
  %v336 = vshrl.u32 %v335, 7
  %v337 = vsub.s32 0, %v336
  %v338 = vrot.slane %v71, %v337
  %v339 = vlaneseq
  %v340 = vshrl.u32 %v339, 7
  %v341 = vsub.s32 0, %v340
  %v342 = vrot.slane %v72, %v341
  %v343 = vmul.f32 %v325, %v330
  %v344 = vmul.f32 %v324, %v334
  %v345 = vmul.f32 %v323, %v338
  %v346 = vmul.f32 %v326, %v342
  %v351 = vrot.slane %v145, 4
  %v352 = vrot.slane %v146, 4
  %v353 = vrot.slane %v147, 4
  %v354 = vrot.slane %v148, 4
  %v363 = vrot.slane %v211, 4
  %v364 = vrot.slane %v212, 4
  %v365 = vrot.slane %v213, 4
  %v366 = vrot.slane %v214, 4
  %v375 = vrot.slane %v244, 4
  %v376 = vrot.slane %v245, 4
  %v377 = vrot.slane %v246, 4
  %v378 = vrot.slane %v247, 4
  %v387 = vrot.slane %v310, 4
  %v388 = vrot.slane %v311, 4
  %v389 = vrot.slane %v312, 4
  %v390 = vrot.slane %v313, 4
  %vm395 = vcmask 1043456
  %v396 = vsel %vm395, %v112, %v351
  %v397 = vsel %vm395, %v113, %v352
  %v398 = vsel %vm395, %v114, %v353
  %v399 = vsel %vm395, %v115, %v354
  %v400 = vsel %vm395, %v178, %v363
  %v401 = vsel %vm395, %v179, %v364
  %v402 = vsel %vm395, %v180, %v365
  %v403 = vsel %vm395, %v181, %v366
  %v404 = vsel %vm395, %v73, %v375
  %v405 = vsel %vm395, %v77, %v376
  %v406 = vsel %vm395, %v74, %v377
  %v407 = vsel %vm395, %v78, %v378
  %v408 = vsel %vm395, %v277, %v387
  %v409 = vsel %vm395, %v278, %v388
  %v410 = vsel %vm395, %v279, %v389
  %v411 = vsel %vm395, %v280, %v390
  %v412 = vld [vmem:[%s4] sm:$0xf]
  %v413 = vld [vmem:[%s5] sm:$0xf]
  %415 = vset.pattern.permute.xlu0 0
  %416 = vperm.xlu0 %415, %v413
  %v417 = vpop.permute.xlu0 %416
  %vm419 = vcmask 293888
  %v421 = vsel %vm419, %v412, 0
  %v424 = vsel %vm395, %v343, 0
  %v427 = vsel %vm395, %v344, 0
  %v430 = vsel %vm395, %v345, 0
  %v433 = vsel %vm395, %v346, 0
  %435 = vmatprep.subr.mxu0 %v397
  %436 = vmatpush1.msra.mxu0 %v396
  %437 = vmatprep.subr.mxu0 %v401
  %438 = vmatpush1.msra.mxu0 %v400
  %439 = vmatprep.subr.mxu0 %v405
  %440 = vmatpush1.msra.mxu0 %v404
  %441 = vmatprep.subr.mxu0 %v409
  %442 = vmatpush1.msra.mxu0 %v408
  %443 = vmatprep.subr.mxu0 %v427
  %444 = vmatpush1.msra.mxu0 %v424
  %445 = vmatprep.subr.mxu0 0.0
  %446 = vmatpush1.msra.mxu0 0.0
  %447 = vmatprep.subr.mxu0 0.0
  %448 = vmatpush1.msra.mxu0 0.0
  %449 = vmatprep.subr.mxu0 0.0
  %450 = vmatpush1.msra.mxu0 0.0
  %451 = vmatprep.subr.mxu0 0.0
  %452 = vmatpush1.msra.mxu0 0.0
  %453 = vmatprep.subr.mxu0 0.0
  %454 = vmatpush1.msra.mxu0 0.0
  %455 = vmatprep.subr.mxu0 0.0
  %456 = vmatpush1.msra.mxu0 0.0
  %457 = vmatprep.subr.mxu0 0.0
  %458 = vmatpush1.msra.mxu0 0.0
  %459 = vmatprep.subr.mxu0 0.0
  %460 = vmatpush1.msra.mxu0 0.0
  %461 = vmatprep.subr.mxu0 0.0
  %462 = vmatpush1.msra.mxu0 0.0
  %463 = vmatprep.subr.mxu0 0.0
  %464 = vmatpush1.msra.mxu0 0.0
  %465 = vmatprep.subr.mxu0 0.0
  %466 = vmatpush1.msra.mxu0 0.0
  %467 = vmatprep.subr.mxu0 0.0
  %468 = vmatpush1.msra.mxu0 0.0
  %469 = vmatprep.subr.mxu0 0.0
  %470 = vmatpush1.msra.mxu0 0.0
  %471 = vmatprep.subr.mxu0 0.0
  %472 = vmatpush1.msra.mxu0 0.0
  %473 = vmatprep.subr.mxu0 0.0
  %474 = vmatpush1.msra.mxu0 0.0
  %475 = vmatprep.subr.mxu0 0.0
  %476 = vmatpush1.msra.mxu0 0.0
  %477 = vmatprep.subr.mxu0 0.0
  %478 = vmatpush1.msra.mxu0 0.0
  %479 = vmatprep.subr.mxu0 0.0
  %480 = vmatpush1.msra.mxu0 0.0
  %481 = vmatprep.subr.mxu0 0.0
  %482 = vmatpush1.msra.mxu0 0.0
  %483 = vmatprep.subr.mxu0 0.0
  %484 = vmatpush1.msra.mxu0 0.0
  %485 = vmatprep.subr.mxu0 0.0
  %486 = vmatpush1.msra.mxu0 0.0
  %487 = vmatprep.subr.mxu0 0.0
  %488 = vmatpush1.msra.mxu0 0.0
  %489 = vmatprep.subr.mxu0 0.0
  %490 = vmatpush1.msra.mxu0 0.0
  %491 = vmatprep.subr.mxu0 0.0
  %492 = vmatpush1.msra.mxu0 0.0
  %493 = vmatprep.subr.mxu0 0.0
  %494 = vmatpush1.msra.mxu0 0.0
  %495 = vmatprep.subr.mxu0 0.0
  %496 = vmatpush1.msra.mxu0 0.0
  %497 = vmatprep.subr.mxu0 0.0
  %498 = vmatpush1.msra.mxu0 0.0
  %499 = vmatprep.mubr.f32.mxu0 0.0
  %500 = vmatmul.mubr.f32.gmra.mrb[0].mxu0 %v421
  %v501 = vpop.f32.mrb[0].mxu0
  %v502 = vadd.f32 %v417, %v501
  %v503 = vpop.f32.mrb[0].mxu0
  %v504 = vadd.f32 %v417, %v503
  %505 = vdwg.mxu0
  %506 = vmatprep.subr.mxu0 %v399
  %507 = vmatpush1.msra.mxu0 %v398
  %508 = vmatprep.subr.mxu0 %v403
  %509 = vmatpush1.msra.mxu0 %v402
  %510 = vmatprep.subr.mxu0 %v407
  %511 = vmatpush1.msra.mxu0 %v406
  %512 = vmatprep.subr.mxu0 %v411
  %513 = vmatpush1.msra.mxu0 %v410
  %514 = vmatprep.subr.mxu0 %v433
  %515 = vmatpush1.msra.mxu0 %v430
  %516 = vmatprep.subr.mxu0 0.0
  %517 = vmatpush1.msra.mxu0 0.0
  %518 = vmatprep.subr.mxu0 0.0
  %519 = vmatpush1.msra.mxu0 0.0
  %520 = vmatprep.subr.mxu0 0.0
  %521 = vmatpush1.msra.mxu0 0.0
  %522 = vmatprep.subr.mxu0 0.0
  %523 = vmatpush1.msra.mxu0 0.0
  %524 = vmatprep.subr.mxu0 0.0
  %525 = vmatpush1.msra.mxu0 0.0
  %526 = vmatprep.subr.mxu0 0.0
  %527 = vmatpush1.msra.mxu0 0.0
  %528 = vmatprep.subr.mxu0 0.0
  %529 = vmatpush1.msra.mxu0 0.0
  %530 = vmatprep.subr.mxu0 0.0
  %531 = vmatpush1.msra.mxu0 0.0
  %532 = vmatprep.subr.mxu0 0.0
  %533 = vmatpush1.msra.mxu0 0.0
  %534 = vmatprep.subr.mxu0 0.0
  %535 = vmatpush1.msra.mxu0 0.0
  %536 = vmatprep.subr.mxu0 0.0
  %537 = vmatpush1.msra.mxu0 0.0
  %538 = vmatprep.subr.mxu0 0.0
  %539 = vmatpush1.msra.mxu0 0.0
  %540 = vmatprep.subr.mxu0 0.0
  %541 = vmatpush1.msra.mxu0 0.0
  %542 = vmatprep.subr.mxu0 0.0
  %543 = vmatpush1.msra.mxu0 0.0
  %544 = vmatprep.subr.mxu0 0.0
  %545 = vmatpush1.msra.mxu0 0.0
  %546 = vmatprep.subr.mxu0 0.0
  %547 = vmatpush1.msra.mxu0 0.0
  %548 = vmatprep.subr.mxu0 0.0
  %549 = vmatpush1.msra.mxu0 0.0
  %550 = vmatprep.subr.mxu0 0.0
  %551 = vmatpush1.msra.mxu0 0.0
  %552 = vmatprep.subr.mxu0 0.0
  %553 = vmatpush1.msra.mxu0 0.0
  %554 = vmatprep.subr.mxu0 0.0
  %555 = vmatpush1.msra.mxu0 0.0
  %556 = vmatprep.subr.mxu0 0.0
  %557 = vmatpush1.msra.mxu0 0.0
  %558 = vmatprep.subr.mxu0 0.0
  %559 = vmatpush1.msra.mxu0 0.0
  %560 = vmatprep.subr.mxu0 0.0
  %561 = vmatpush1.msra.mxu0 0.0
  %562 = vmatprep.subr.mxu0 0.0
  %563 = vmatpush1.msra.mxu0 0.0
  %564 = vmatprep.subr.mxu0 0.0
  %565 = vmatpush1.msra.mxu0 0.0
  %566 = vmatprep.subr.mxu0 0.0
  %567 = vmatpush1.msra.mxu0 0.0
  %568 = vmatprep.subr.mxu0 0.0
  %569 = vmatpush1.msra.mxu0 0.0
  %570 = vmatprep.mubr.f32.mxu0 0.0
  %571 = vmatmul.mubr.f32.gmra.mrb[0].mxu0 %v421
  %v572 = vpop.f32.mrb[0].mxu0
  %v573 = vadd.f32 %v417, %v572
  %v574 = vpop.f32.mrb[0].mxu0
  %v575 = vadd.f32 %v417, %v574
  %576 = vdwg.mxu0
  %v577 = vsel %vm395, %v502, 0.0
  %v578 = vsel %vm395, %v504, 0.0
  %v579 = vadd.f32 %v577, %v578
  %v580 = vsel %vm395, %v573, 0.0
  %v581 = vadd.f32 %v579, %v580
  %v582 = vsel %vm395, %v575, 0.0
  %v583 = vadd.f32 %v581, %v582
  %584 = vadd.xlane.f32.xlu0 %v583
  %v585 = vpop.xlane.xlu0 %584
  %v586 = vrcp.pop 512.0
  %v587 = vmul.f32 %v585, %v586
  %v588 = vsub.f32 %v502, %v587
  %v589 = vsub.f32 %v504, %v587
  %v590 = vsub.f32 %v573, %v587
  %v591 = vsub.f32 %v575, %v587
  %v592 = vmul.f32 %v588, %v588
  %v593 = vmul.f32 %v589, %v589
  %v594 = vmul.f32 %v590, %v590
  %v595 = vmul.f32 %v591, %v591
  %v596 = vsel %vm395, %v592, 0.0
  %v597 = vsel %vm395, %v593, 0.0
  %v598 = vadd.f32 %v596, %v597
  %v599 = vsel %vm395, %v594, 0.0
  %v600 = vadd.f32 %v598, %v599
  %v601 = vsel %vm395, %v595, 0.0
  %v602 = vadd.f32 %v600, %v601
  %603 = vadd.xlane.f32.xlu0 %v602
  %v604 = vpop.xlane.xlu0 %603
  %v605 = vmul.f32 %v604, %v586
  %v606 = vadd.f32 %v605, 1e-05
  %v607 = vrsqrt.pop %v606
  %v608 = vmul.f32 %v588, %v607
  %v609 = vmul.f32 %v589, %v607
  %v610 = vmul.f32 %v590, %v607
  %v611 = vmul.f32 %v591, %v607
  %v612 = vld [vmem:[%s6] sm:$0xf]
  %614 = vset.pattern.permute.xlu0 0
  %615 = vperm.xlu0 %614, %v612
  %v616 = vpop.permute.xlu0 %615
  %v618 = vmul.f32 %v608, %v616
  %v619 = vmul.f32 %v609, %v616
  %v620 = vmul.f32 %v610, %v616
  %v621 = vmul.f32 %v611, %v616
  %v622 = vld [vmem:[%s7] sm:$0xf]
  %624 = vset.pattern.permute.xlu0 0
  %625 = vperm.xlu0 %624, %v622
  %v626 = vpop.permute.xlu0 %625
  %v628 = vadd.f32 %v618, %v626
  %v629 = vadd.f32 %v619, %v626
  %v630 = vadd.f32 %v620, %v626
  %v631 = vadd.f32 %v621, %v626
  %v632 = vmax.f32 %v628, 0.0
  %v633 = vmax.f32 %v629, 0.0
  %v634 = vmax.f32 %v630, 0.0
  %v635 = vmax.f32 %v631, 0.0
  %v636 = vld [vmem:[%s1] sm:$0xf]
  %v637 = vld [vmem:[%s2] sm:$0xff]
  %v638 = vld [vmem:[%s2 + $0x8] sm:$0xff]
  %v639 = vld [vmem:[%s2 + $0x10] sm:$0xff]
  %v640 = vld [vmem:[%s2 + $0x18] sm:$0xff]
  %v641 = vld [vmem:[%s2 + $0x20] sm:$0xff]
  %v642 = vld [vmem:[%s2 + $0x28] sm:$0xff]
  %v643 = vld [vmem:[%s2 + $0x30] sm:$0xff]
  %v644 = vld [vmem:[%s2 + $0x38] sm:$0xff]
  %v645 = vld [vmem:[%s2 + $0x40] sm:$0xff]
  %v646 = vld [vmem:[%s2 + $0x48] sm:$0xff]
  %v647 = vld [vmem:[%s2 + $0x50] sm:$0xff]
  %v648 = vld [vmem:[%s2 + $0x58] sm:$0xff]
  %v649 = vld [vmem:[%s2 + $0x60] sm:$0xff]
  %v650 = vld [vmem:[%s2 + $0x68] sm:$0xff]
  %v651 = vld [vmem:[%s2 + $0x70] sm:$0xff]
  %v652 = vld [vmem:[%s2 + $0x78] sm:$0xff]
  %v653 = vld [vmem:[%s2 + $0x80] sm:$0xff]
  %v654 = vld [vmem:[%s2 + $0x88] sm:$0xff]
  %v655 = vld [vmem:[%s2 + $0x90] sm:$0xff]
  %v656 = vld [vmem:[%s2 + $0x98] sm:$0xff]
  %v657 = vld [vmem:[%s2 + $0xa0] sm:$0xff]
  %v658 = vld [vmem:[%s2 + $0xa8] sm:$0xff]
  %v659 = vld [vmem:[%s2 + $0xb0] sm:$0xff]
  %v660 = vld [vmem:[%s2 + $0xb8] sm:$0xff]
  %v661 = vld [vmem:[%s2 + $0xc0] sm:$0xff]
  %v662 = vld [vmem:[%s2 + $0xc8] sm:$0xff]
  %v663 = vld [vmem:[%s2 + $0xd0] sm:$0xff]
  %v664 = vld [vmem:[%s2 + $0xd8] sm:$0xff]
  %v665 = vld [vmem:[%s2 + $0xe0] sm:$0xff]
  %v666 = vld [vmem:[%s2 + $0xe8] sm:$0xff]
  %v667 = vld [vmem:[%s2 + $0xf0] sm:$0xff]
  %v668 = vld [vmem:[%s2 + $0xf8] sm:$0xff]
  %v669 = vld [vmem:[%s2 + $0x100] sm:$0xff]
  %v670 = vld [vmem:[%s2 + $0x108] sm:$0xff]
  %v671 = vld [vmem:[%s2 + $0x110] sm:$0xff]
  %v672 = vld [vmem:[%s2 + $0x118] sm:$0xff]
  %v673 = vld [vmem:[%s2 + $0x120] sm:$0xff]
  %v674 = vld [vmem:[%s2 + $0x128] sm:$0xff]
  %v675 = vld [vmem:[%s2 + $0x130] sm:$0xff]
  %v676 = vld [vmem:[%s2 + $0x138] sm:$0xff]
  %v677 = vld [vmem:[%s2 + $0x140] sm:$0xff]
  %v678 = vld [vmem:[%s2 + $0x148] sm:$0xff]
  %v679 = vld [vmem:[%s2 + $0x150] sm:$0xff]
  %v680 = vld [vmem:[%s2 + $0x158] sm:$0xff]
  %v681 = vld [vmem:[%s2 + $0x160] sm:$0xff]
  %v682 = vld [vmem:[%s2 + $0x168] sm:$0xff]
  %v683 = vld [vmem:[%s2 + $0x170] sm:$0xff]
  %v684 = vld [vmem:[%s2 + $0x178] sm:$0xff]
  %v685 = vld [vmem:[%s2 + $0x180] sm:$0xff]
  %v686 = vld [vmem:[%s2 + $0x188] sm:$0xff]
  %v687 = vld [vmem:[%s2 + $0x190] sm:$0xff]
  %v688 = vld [vmem:[%s2 + $0x198] sm:$0xff]
  %v689 = vld [vmem:[%s2 + $0x1a0] sm:$0xff]
  %v690 = vld [vmem:[%s2 + $0x1a8] sm:$0xff]
  %v691 = vld [vmem:[%s2 + $0x1b0] sm:$0xff]
  %v692 = vld [vmem:[%s2 + $0x1b8] sm:$0xff]
  %v693 = vld [vmem:[%s2 + $0x1c0] sm:$0xff]
  %v694 = vld [vmem:[%s2 + $0x1c8] sm:$0xff]
  %v695 = vld [vmem:[%s2 + $0x1d0] sm:$0xff]
  %v696 = vld [vmem:[%s2 + $0x1d8] sm:$0xff]
  %v697 = vld [vmem:[%s2 + $0x1e0] sm:$0xff]
  %v698 = vld [vmem:[%s2 + $0x1e8] sm:$0xff]
  %v699 = vld [vmem:[%s2 + $0x1f0] sm:$0xff]
  %v700 = vld [vmem:[%s2 + $0x1f8] sm:$0xff]
  %701 = vmatprep.subr.mxu0 %v638
  %702 = vmatpush1.msra.mxu0 %v637
  %703 = vmatprep.subr.mxu0 %v642
  %704 = vmatpush1.msra.mxu0 %v641
  %705 = vmatprep.subr.mxu0 %v646
  %706 = vmatpush1.msra.mxu0 %v645
  %707 = vmatprep.subr.mxu0 %v650
  %708 = vmatpush1.msra.mxu0 %v649
  %709 = vmatprep.subr.mxu0 %v654
  %710 = vmatpush1.msra.mxu0 %v653
  %711 = vmatprep.subr.mxu0 %v658
  %712 = vmatpush1.msra.mxu0 %v657
  %713 = vmatprep.subr.mxu0 %v662
  %714 = vmatpush1.msra.mxu0 %v661
  %715 = vmatprep.subr.mxu0 %v666
  %716 = vmatpush1.msra.mxu0 %v665
  %717 = vmatprep.subr.mxu0 %v670
  %718 = vmatpush1.msra.mxu0 %v669
  %719 = vmatprep.subr.mxu0 %v674
  %720 = vmatpush1.msra.mxu0 %v673
  %721 = vmatprep.subr.mxu0 %v678
  %722 = vmatpush1.msra.mxu0 %v677
  %723 = vmatprep.subr.mxu0 %v682
  %724 = vmatpush1.msra.mxu0 %v681
  %725 = vmatprep.subr.mxu0 %v686
  %726 = vmatpush1.msra.mxu0 %v685
  %727 = vmatprep.subr.mxu0 %v690
  %728 = vmatpush1.msra.mxu0 %v689
  %729 = vmatprep.subr.mxu0 %v694
  %730 = vmatpush1.msra.mxu0 %v693
  %731 = vmatprep.subr.mxu0 %v698
  %732 = vmatpush1.msra.mxu0 %v697
  %733 = vmatprep.subr.mxu0 0.0
  %734 = vmatpush1.msra.mxu0 0.0
  %735 = vmatprep.subr.mxu0 0.0
  %736 = vmatpush1.msra.mxu0 0.0
  %737 = vmatprep.subr.mxu0 0.0
  %738 = vmatpush1.msra.mxu0 0.0
  %739 = vmatprep.subr.mxu0 0.0
  %740 = vmatpush1.msra.mxu0 0.0
  %741 = vmatprep.subr.mxu0 0.0
  %742 = vmatpush1.msra.mxu0 0.0
  %743 = vmatprep.subr.mxu0 0.0
  %744 = vmatpush1.msra.mxu0 0.0
  %745 = vmatprep.subr.mxu0 0.0
  %746 = vmatpush1.msra.mxu0 0.0
  %747 = vmatprep.subr.mxu0 0.0
  %748 = vmatpush1.msra.mxu0 0.0
  %749 = vmatprep.subr.mxu0 0.0
  %750 = vmatpush1.msra.mxu0 0.0
  %751 = vmatprep.subr.mxu0 0.0
  %752 = vmatpush1.msra.mxu0 0.0
  %753 = vmatprep.subr.mxu0 0.0
  %754 = vmatpush1.msra.mxu0 0.0
  %755 = vmatprep.subr.mxu0 0.0
  %756 = vmatpush1.msra.mxu0 0.0
  %757 = vmatprep.subr.mxu0 0.0
  %758 = vmatpush1.msra.mxu0 0.0
  %759 = vmatprep.subr.mxu0 0.0
  %760 = vmatpush1.msra.mxu0 0.0
  %761 = vmatprep.subr.mxu0 0.0
  %762 = vmatpush1.msra.mxu0 0.0
  %763 = vmatprep.subr.mxu0 0.0
  %764 = vmatpush1.msra.mxu0 0.0
  %765 = vmatprep.mubr.f32.mxu0 0.0
  %766 = vmatmul.mubr.f32.gmra.mrb[0].mxu0 %v636
  %v767 = vpop.f32.mrb[0].mxu0
  %v768 = vadd.f32 0.0, %v767
  %v769 = vpop.f32.mrb[0].mxu0
  %v770 = vadd.f32 0.0, %v769
  %771 = vdwg.mxu0
  %772 = vmatprep.subr.mxu0 %v640
  %773 = vmatpush1.msra.mxu0 %v639
  %774 = vmatprep.subr.mxu0 %v644
  %775 = vmatpush1.msra.mxu0 %v643
  %776 = vmatprep.subr.mxu0 %v648
  %777 = vmatpush1.msra.mxu0 %v647
  %778 = vmatprep.subr.mxu0 %v652
  %779 = vmatpush1.msra.mxu0 %v651
  %780 = vmatprep.subr.mxu0 %v656
  %781 = vmatpush1.msra.mxu0 %v655
  %782 = vmatprep.subr.mxu0 %v660
  %783 = vmatpush1.msra.mxu0 %v659
  %784 = vmatprep.subr.mxu0 %v664
  %785 = vmatpush1.msra.mxu0 %v663
  %786 = vmatprep.subr.mxu0 %v668
  %787 = vmatpush1.msra.mxu0 %v667
  %788 = vmatprep.subr.mxu0 %v672
  %789 = vmatpush1.msra.mxu0 %v671
  %790 = vmatprep.subr.mxu0 %v676
  %791 = vmatpush1.msra.mxu0 %v675
  %792 = vmatprep.subr.mxu0 %v680
  %793 = vmatpush1.msra.mxu0 %v679
  %794 = vmatprep.subr.mxu0 %v684
  %795 = vmatpush1.msra.mxu0 %v683
  %796 = vmatprep.subr.mxu0 %v688
  %797 = vmatpush1.msra.mxu0 %v687
  %798 = vmatprep.subr.mxu0 %v692
  %799 = vmatpush1.msra.mxu0 %v691
  %800 = vmatprep.subr.mxu0 %v696
  %801 = vmatpush1.msra.mxu0 %v695
  %802 = vmatprep.subr.mxu0 %v700
  %803 = vmatpush1.msra.mxu0 %v699
  %804 = vmatprep.subr.mxu0 0.0
  %805 = vmatpush1.msra.mxu0 0.0
  %806 = vmatprep.subr.mxu0 0.0
  %807 = vmatpush1.msra.mxu0 0.0
  %808 = vmatprep.subr.mxu0 0.0
  %809 = vmatpush1.msra.mxu0 0.0
  %810 = vmatprep.subr.mxu0 0.0
  %811 = vmatpush1.msra.mxu0 0.0
  %812 = vmatprep.subr.mxu0 0.0
  %813 = vmatpush1.msra.mxu0 0.0
  %814 = vmatprep.subr.mxu0 0.0
  %815 = vmatpush1.msra.mxu0 0.0
  %816 = vmatprep.subr.mxu0 0.0
  %817 = vmatpush1.msra.mxu0 0.0
  %818 = vmatprep.subr.mxu0 0.0
  %819 = vmatpush1.msra.mxu0 0.0
  %820 = vmatprep.subr.mxu0 0.0
  %821 = vmatpush1.msra.mxu0 0.0
  %822 = vmatprep.subr.mxu0 0.0
  %823 = vmatpush1.msra.mxu0 0.0
  %824 = vmatprep.subr.mxu0 0.0
  %825 = vmatpush1.msra.mxu0 0.0
  %826 = vmatprep.subr.mxu0 0.0
  %827 = vmatpush1.msra.mxu0 0.0
  %828 = vmatprep.subr.mxu0 0.0
  %829 = vmatpush1.msra.mxu0 0.0
  %830 = vmatprep.subr.mxu0 0.0
  %831 = vmatpush1.msra.mxu0 0.0
  %832 = vmatprep.subr.mxu0 0.0
  %833 = vmatpush1.msra.mxu0 0.0
  %834 = vmatprep.subr.mxu0 0.0
  %835 = vmatpush1.msra.mxu0 0.0
  %836 = vmatprep.mubr.f32.mxu0 0.0
  %837 = vmatmul.mubr.f32.gmra.mrb[0].mxu0 %v636
  %v838 = vpop.f32.mrb[0].mxu0
  %v839 = vadd.f32 0.0, %v838
  %v840 = vpop.f32.mrb[0].mxu0
  %v841 = vadd.f32 0.0, %v840
  %842 = vdwg.mxu0
  %843 = vrot.lane.b32.xlu0 %v768, 17
  %v844 = vpop.permute.xlu0 %843
  %845 = vrot.lane.b32.xlu0 %v770, 17
  %v846 = vpop.permute.xlu0 %845
  %847 = vrot.lane.b32.xlu0 %v839, 17
  %v848 = vpop.permute.xlu0 %847
  %849 = vrot.lane.b32.xlu0 %v841, 17
  %v850 = vpop.permute.xlu0 %849
  %v851 = vsel %vm91, %v848, %v850
  %v852 = vsel %vm91, %v846, %v848
  %v853 = vsel %vm91, %v844, %v846
  %v854 = vsel %vm91, %v850, %v844
  %v855 = vmul.f32 %v854, %v99
  %v856 = vmul.f32 %v853, %v103
  %v857 = vmul.f32 %v852, %v107
  %v858 = vmul.f32 %v851, %v111
  %859 = vrot.lane.b32.xlu0 %v768, 16
  %v860 = vpop.permute.xlu0 %859
  %861 = vrot.lane.b32.xlu0 %v770, 16
  %v862 = vpop.permute.xlu0 %861
  %863 = vrot.lane.b32.xlu0 %v839, 16
  %v864 = vpop.permute.xlu0 %863
  %865 = vrot.lane.b32.xlu0 %v841, 16
  %v866 = vpop.permute.xlu0 %865
  %v867 = vsel %vm124, %v864, %v866
  %v868 = vsel %vm124, %v862, %v864
  %v869 = vsel %vm124, %v860, %v862
  %v870 = vsel %vm124, %v866, %v860
  %v871 = vmul.f32 %v870, %v132
  %v872 = vmul.f32 %v869, %v136
  %v873 = vmul.f32 %v868, %v140
  %v874 = vmul.f32 %v867, %v144
  %875 = vrot.lane.b32.xlu0 %v768, 15
  %v876 = vpop.permute.xlu0 %875
  %877 = vrot.lane.b32.xlu0 %v770, 15
  %v878 = vpop.permute.xlu0 %877
  %879 = vrot.lane.b32.xlu0 %v839, 15
  %v880 = vpop.permute.xlu0 %879
  %881 = vrot.lane.b32.xlu0 %v841, 15
  %v882 = vpop.permute.xlu0 %881
  %v883 = vsel %vm157, %v880, %v882
  %v884 = vsel %vm157, %v878, %v880
  %v885 = vsel %vm157, %v876, %v878
  %v886 = vsel %vm157, %v882, %v876
  %v887 = vmul.f32 %v886, %v165
  %v888 = vmul.f32 %v885, %v169
  %v889 = vmul.f32 %v884, %v173
  %v890 = vmul.f32 %v883, %v177
  %891 = vrot.lane.b32.xlu0 %v768, 1
  %v892 = vpop.permute.xlu0 %891
  %893 = vrot.lane.b32.xlu0 %v770, 1
  %v894 = vpop.permute.xlu0 %893
  %895 = vrot.lane.b32.xlu0 %v839, 1
  %v896 = vpop.permute.xlu0 %895
  %897 = vrot.lane.b32.xlu0 %v841, 1
  %v898 = vpop.permute.xlu0 %897
  %v899 = vsel %vm190, %v896, %v898
  %v900 = vsel %vm190, %v894, %v896
  %v901 = vsel %vm190, %v892, %v894
  %v902 = vsel %vm190, %v898, %v892
  %v903 = vmul.f32 %v902, %v198
  %v904 = vmul.f32 %v901, %v202
  %v905 = vmul.f32 %v900, %v206
  %v906 = vmul.f32 %v899, %v210
  %907 = vrot.lane.b32.xlu0 %v768, 127
  %v908 = vpop.permute.xlu0 %907
  %909 = vrot.lane.b32.xlu0 %v770, 127
  %v910 = vpop.permute.xlu0 %909
  %911 = vrot.lane.b32.xlu0 %v839, 127
  %v912 = vpop.permute.xlu0 %911
  %913 = vrot.lane.b32.xlu0 %v841, 127
  %v914 = vpop.permute.xlu0 %913
  %v915 = vsel %vm223, %v912, %v914
  %v916 = vsel %vm223, %v910, %v912
  %v917 = vsel %vm223, %v908, %v910
  %v918 = vsel %vm223, %v914, %v908
  %v919 = vmul.f32 %v917, %v231
  %v920 = vmul.f32 %v916, %v235
  %v921 = vmul.f32 %v915, %v239
  %v922 = vmul.f32 %v918, %v243
  %923 = vrot.lane.b32.xlu0 %v768, 113
  %v924 = vpop.permute.xlu0 %923
  %925 = vrot.lane.b32.xlu0 %v770, 113
  %v926 = vpop.permute.xlu0 %925
  %927 = vrot.lane.b32.xlu0 %v839, 113
  %v928 = vpop.permute.xlu0 %927
  %929 = vrot.lane.b32.xlu0 %v841, 113
  %v930 = vpop.permute.xlu0 %929
  %v931 = vsel %vm256, %v928, %v930
  %v932 = vsel %vm256, %v926, %v928
  %v933 = vsel %vm256, %v924, %v926
  %v934 = vsel %vm256, %v930, %v924
  %v935 = vmul.f32 %v933, %v264
  %v936 = vmul.f32 %v932, %v268
  %v937 = vmul.f32 %v931, %v272
  %v938 = vmul.f32 %v934, %v276
  %939 = vrot.lane.b32.xlu0 %v768, 112
  %v940 = vpop.permute.xlu0 %939
  %941 = vrot.lane.b32.xlu0 %v770, 112
  %v942 = vpop.permute.xlu0 %941
  %943 = vrot.lane.b32.xlu0 %v839, 112
  %v944 = vpop.permute.xlu0 %943
  %945 = vrot.lane.b32.xlu0 %v841, 112
  %v946 = vpop.permute.xlu0 %945
  %v947 = vsel %vm289, %v944, %v946
  %v948 = vsel %vm289, %v942, %v944
  %v949 = vsel %vm289, %v940, %v942
  %v950 = vsel %vm289, %v946, %v940
  %v951 = vmul.f32 %v949, %v297
  %v952 = vmul.f32 %v948, %v301
  %v953 = vmul.f32 %v947, %v305
  %v954 = vmul.f32 %v950, %v309
  %955 = vrot.lane.b32.xlu0 %v768, 111
  %v956 = vpop.permute.xlu0 %955
  %957 = vrot.lane.b32.xlu0 %v770, 111
  %v958 = vpop.permute.xlu0 %957
  %959 = vrot.lane.b32.xlu0 %v839, 111
  %v960 = vpop.permute.xlu0 %959
  %961 = vrot.lane.b32.xlu0 %v841, 111
  %v962 = vpop.permute.xlu0 %961
  %v963 = vsel %vm322, %v960, %v962
  %v964 = vsel %vm322, %v958, %v960
  %v965 = vsel %vm322, %v956, %v958
  %v966 = vsel %vm322, %v962, %v956
  %v967 = vmul.f32 %v965, %v330
  %v968 = vmul.f32 %v964, %v334
  %v969 = vmul.f32 %v963, %v338
  %v970 = vmul.f32 %v966, %v342
  %v975 = vrot.slane %v871, 4
  %v976 = vrot.slane %v872, 4
  %v977 = vrot.slane %v873, 4
  %v978 = vrot.slane %v874, 4
  %v987 = vrot.slane %v903, 4
  %v988 = vrot.slane %v904, 4
  %v989 = vrot.slane %v905, 4
  %v990 = vrot.slane %v906, 4
  %v999 = vrot.slane %v919, 4
  %v1000 = vrot.slane %v920, 4
  %v1001 = vrot.slane %v921, 4
  %v1002 = vrot.slane %v922, 4
  %v1011 = vrot.slane %v951, 4
  %v1012 = vrot.slane %v952, 4
  %v1013 = vrot.slane %v953, 4
  %v1014 = vrot.slane %v954, 4
  %v1019 = vsel %vm395, %v855, %v975
  %v1020 = vsel %vm395, %v856, %v976
  %v1021 = vsel %vm395, %v857, %v977
  %v1022 = vsel %vm395, %v858, %v978
  %v1023 = vsel %vm395, %v887, %v987
  %v1024 = vsel %vm395, %v888, %v988
  %v1025 = vsel %vm395, %v889, %v989
  %v1026 = vsel %vm395, %v890, %v990
  %v1027 = vsel %vm395, %v768, %v999
  %v1028 = vsel %vm395, %v770, %v1000
  %v1029 = vsel %vm395, %v839, %v1001
  %v1030 = vsel %vm395, %v841, %v1002
  %v1031 = vsel %vm395, %v935, %v1011
  %v1032 = vsel %vm395, %v936, %v1012
  %v1033 = vsel %vm395, %v937, %v1013
  %v1034 = vsel %vm395, %v938, %v1014
  %v1035 = vld [vmem:[%s8] sm:$0xf]
  %v1036 = vld [vmem:[%s9] sm:$0xf]
  %1038 = vset.pattern.permute.xlu0 0
  %1039 = vperm.xlu0 %1038, %v1036
  %v1040 = vpop.permute.xlu0 %1039
  %v1043 = vsel %vm419, %v1035, 0
  %v1046 = vsel %vm395, %v967, 0
  %v1049 = vsel %vm395, %v968, 0
  %v1052 = vsel %vm395, %v969, 0
  %v1055 = vsel %vm395, %v970, 0
  %1057 = vmatprep.subr.mxu0 %v1020
  %1058 = vmatpush1.msra.mxu0 %v1019
  %1059 = vmatprep.subr.mxu0 %v1024
  %1060 = vmatpush1.msra.mxu0 %v1023
  %1061 = vmatprep.subr.mxu0 %v1028
  %1062 = vmatpush1.msra.mxu0 %v1027
  %1063 = vmatprep.subr.mxu0 %v1032
  %1064 = vmatpush1.msra.mxu0 %v1031
  %1065 = vmatprep.subr.mxu0 %v1049
  %1066 = vmatpush1.msra.mxu0 %v1046
  %1067 = vmatprep.subr.mxu0 0.0
  %1068 = vmatpush1.msra.mxu0 0.0
  %1069 = vmatprep.subr.mxu0 0.0
  %1070 = vmatpush1.msra.mxu0 0.0
  %1071 = vmatprep.subr.mxu0 0.0
  %1072 = vmatpush1.msra.mxu0 0.0
  %1073 = vmatprep.subr.mxu0 0.0
  %1074 = vmatpush1.msra.mxu0 0.0
  %1075 = vmatprep.subr.mxu0 0.0
  %1076 = vmatpush1.msra.mxu0 0.0
  %1077 = vmatprep.subr.mxu0 0.0
  %1078 = vmatpush1.msra.mxu0 0.0
  %1079 = vmatprep.subr.mxu0 0.0
  %1080 = vmatpush1.msra.mxu0 0.0
  %1081 = vmatprep.subr.mxu0 0.0
  %1082 = vmatpush1.msra.mxu0 0.0
  %1083 = vmatprep.subr.mxu0 0.0
  %1084 = vmatpush1.msra.mxu0 0.0
  %1085 = vmatprep.subr.mxu0 0.0
  %1086 = vmatpush1.msra.mxu0 0.0
  %1087 = vmatprep.subr.mxu0 0.0
  %1088 = vmatpush1.msra.mxu0 0.0
  %1089 = vmatprep.subr.mxu0 0.0
  %1090 = vmatpush1.msra.mxu0 0.0
  %1091 = vmatprep.subr.mxu0 0.0
  %1092 = vmatpush1.msra.mxu0 0.0
  %1093 = vmatprep.subr.mxu0 0.0
  %1094 = vmatpush1.msra.mxu0 0.0
  %1095 = vmatprep.subr.mxu0 0.0
  %1096 = vmatpush1.msra.mxu0 0.0
  %1097 = vmatprep.subr.mxu0 0.0
  %1098 = vmatpush1.msra.mxu0 0.0
  %1099 = vmatprep.subr.mxu0 0.0
  %1100 = vmatpush1.msra.mxu0 0.0
  %1101 = vmatprep.subr.mxu0 0.0
  %1102 = vmatpush1.msra.mxu0 0.0
  %1103 = vmatprep.subr.mxu0 0.0
  %1104 = vmatpush1.msra.mxu0 0.0
  %1105 = vmatprep.subr.mxu0 0.0
  %1106 = vmatpush1.msra.mxu0 0.0
  %1107 = vmatprep.subr.mxu0 0.0
  %1108 = vmatpush1.msra.mxu0 0.0
  %1109 = vmatprep.subr.mxu0 0.0
  %1110 = vmatpush1.msra.mxu0 0.0
  %1111 = vmatprep.subr.mxu0 0.0
  %1112 = vmatpush1.msra.mxu0 0.0
  %1113 = vmatprep.subr.mxu0 0.0
  %1114 = vmatpush1.msra.mxu0 0.0
  %1115 = vmatprep.subr.mxu0 0.0
  %1116 = vmatpush1.msra.mxu0 0.0
  %1117 = vmatprep.subr.mxu0 0.0
  %1118 = vmatpush1.msra.mxu0 0.0
  %1119 = vmatprep.subr.mxu0 0.0
  %1120 = vmatpush1.msra.mxu0 0.0
  %1121 = vmatprep.mubr.f32.mxu0 0.0
  %1122 = vmatmul.mubr.f32.gmra.mrb[0].mxu0 %v1043
  %v1123 = vpop.f32.mrb[0].mxu0
  %v1124 = vadd.f32 %v1040, %v1123
  %v1125 = vpop.f32.mrb[0].mxu0
  %v1126 = vadd.f32 %v1040, %v1125
  %1127 = vdwg.mxu0
  %1128 = vmatprep.subr.mxu0 %v1022
  %1129 = vmatpush1.msra.mxu0 %v1021
  %1130 = vmatprep.subr.mxu0 %v1026
  %1131 = vmatpush1.msra.mxu0 %v1025
  %1132 = vmatprep.subr.mxu0 %v1030
  %1133 = vmatpush1.msra.mxu0 %v1029
  %1134 = vmatprep.subr.mxu0 %v1034
  %1135 = vmatpush1.msra.mxu0 %v1033
  %1136 = vmatprep.subr.mxu0 %v1055
  %1137 = vmatpush1.msra.mxu0 %v1052
  %1138 = vmatprep.subr.mxu0 0.0
  %1139 = vmatpush1.msra.mxu0 0.0
  %1140 = vmatprep.subr.mxu0 0.0
  %1141 = vmatpush1.msra.mxu0 0.0
  %1142 = vmatprep.subr.mxu0 0.0
  %1143 = vmatpush1.msra.mxu0 0.0
  %1144 = vmatprep.subr.mxu0 0.0
  %1145 = vmatpush1.msra.mxu0 0.0
  %1146 = vmatprep.subr.mxu0 0.0
  %1147 = vmatpush1.msra.mxu0 0.0
  %1148 = vmatprep.subr.mxu0 0.0
  %1149 = vmatpush1.msra.mxu0 0.0
  %1150 = vmatprep.subr.mxu0 0.0
  %1151 = vmatpush1.msra.mxu0 0.0
  %1152 = vmatprep.subr.mxu0 0.0
  %1153 = vmatpush1.msra.mxu0 0.0
  %1154 = vmatprep.subr.mxu0 0.0
  %1155 = vmatpush1.msra.mxu0 0.0
  %1156 = vmatprep.subr.mxu0 0.0
  %1157 = vmatpush1.msra.mxu0 0.0
  %1158 = vmatprep.subr.mxu0 0.0
  %1159 = vmatpush1.msra.mxu0 0.0
  %1160 = vmatprep.subr.mxu0 0.0
  %1161 = vmatpush1.msra.mxu0 0.0
  %1162 = vmatprep.subr.mxu0 0.0
  %1163 = vmatpush1.msra.mxu0 0.0
  %1164 = vmatprep.subr.mxu0 0.0
  %1165 = vmatpush1.msra.mxu0 0.0
  %1166 = vmatprep.subr.mxu0 0.0
  %1167 = vmatpush1.msra.mxu0 0.0
  %1168 = vmatprep.subr.mxu0 0.0
  %1169 = vmatpush1.msra.mxu0 0.0
  %1170 = vmatprep.subr.mxu0 0.0
  %1171 = vmatpush1.msra.mxu0 0.0
  %1172 = vmatprep.subr.mxu0 0.0
  %1173 = vmatpush1.msra.mxu0 0.0
  %1174 = vmatprep.subr.mxu0 0.0
  %1175 = vmatpush1.msra.mxu0 0.0
  %1176 = vmatprep.subr.mxu0 0.0
  %1177 = vmatpush1.msra.mxu0 0.0
  %1178 = vmatprep.subr.mxu0 0.0
  %1179 = vmatpush1.msra.mxu0 0.0
  %1180 = vmatprep.subr.mxu0 0.0
  %1181 = vmatpush1.msra.mxu0 0.0
  %1182 = vmatprep.subr.mxu0 0.0
  %1183 = vmatpush1.msra.mxu0 0.0
  %1184 = vmatprep.subr.mxu0 0.0
  %1185 = vmatpush1.msra.mxu0 0.0
  %1186 = vmatprep.subr.mxu0 0.0
  %1187 = vmatpush1.msra.mxu0 0.0
  %1188 = vmatprep.subr.mxu0 0.0
  %1189 = vmatpush1.msra.mxu0 0.0
  %1190 = vmatprep.subr.mxu0 0.0
  %1191 = vmatpush1.msra.mxu0 0.0
  %1192 = vmatprep.mubr.f32.mxu0 0.0
  %1193 = vmatmul.mubr.f32.gmra.mrb[0].mxu0 %v1043
  %v1194 = vpop.f32.mrb[0].mxu0
  %v1195 = vadd.f32 %v1040, %v1194
  %v1196 = vpop.f32.mrb[0].mxu0
  %v1197 = vadd.f32 %v1040, %v1196
  %1198 = vdwg.mxu0
  %v1199 = vsel %vm395, %v1124, 0.0
  %v1200 = vsel %vm395, %v1126, 0.0
  %v1201 = vadd.f32 %v1199, %v1200
  %v1202 = vsel %vm395, %v1195, 0.0
  %v1203 = vadd.f32 %v1201, %v1202
  %v1204 = vsel %vm395, %v1197, 0.0
  %v1205 = vadd.f32 %v1203, %v1204
  %1206 = vadd.xlane.f32.xlu0 %v1205
  %v1207 = vpop.xlane.xlu0 %1206
  %v1208 = vmul.f32 %v1207, %v586
  %v1209 = vsub.f32 %v1124, %v1208
  %v1210 = vsub.f32 %v1126, %v1208
  %v1211 = vsub.f32 %v1195, %v1208
  %v1212 = vsub.f32 %v1197, %v1208
  %v1213 = vmul.f32 %v1209, %v1209
  %v1214 = vmul.f32 %v1210, %v1210
  %v1215 = vmul.f32 %v1211, %v1211
  %v1216 = vmul.f32 %v1212, %v1212
  %v1217 = vsel %vm395, %v1213, 0.0
  %v1218 = vsel %vm395, %v1214, 0.0
  %v1219 = vadd.f32 %v1217, %v1218
  %v1220 = vsel %vm395, %v1215, 0.0
  %v1221 = vadd.f32 %v1219, %v1220
  %v1222 = vsel %vm395, %v1216, 0.0
  %v1223 = vadd.f32 %v1221, %v1222
  %1224 = vadd.xlane.f32.xlu0 %v1223
  %v1225 = vpop.xlane.xlu0 %1224
  %v1226 = vmul.f32 %v1225, %v586
  %v1227 = vadd.f32 %v1226, 1e-05
  %v1228 = vrsqrt.pop %v1227
  %v1229 = vmul.f32 %v1209, %v1228
  %v1230 = vmul.f32 %v1210, %v1228
  %v1231 = vmul.f32 %v1211, %v1228
  %v1232 = vmul.f32 %v1212, %v1228
  %v1233 = vld [vmem:[%s10] sm:$0xf]
  %1235 = vset.pattern.permute.xlu0 0
  %1236 = vperm.xlu0 %1235, %v1233
  %v1237 = vpop.permute.xlu0 %1236
  %v1239 = vmul.f32 %v1229, %v1237
  %v1240 = vmul.f32 %v1230, %v1237
  %v1241 = vmul.f32 %v1231, %v1237
  %v1242 = vmul.f32 %v1232, %v1237
  %v1243 = vld [vmem:[%s11] sm:$0xf]
  %1245 = vset.pattern.permute.xlu0 0
  %1246 = vperm.xlu0 %1245, %v1243
  %v1247 = vpop.permute.xlu0 %1246
  %v1249 = vadd.f32 %v1239, %v1247
  %v1250 = vadd.f32 %v1240, %v1247
  %v1251 = vadd.f32 %v1241, %v1247
  %v1252 = vadd.f32 %v1242, %v1247
  %v1253 = vmax.f32 %v1249, 0.0
  %v1254 = vmax.f32 %v1250, 0.0
  %v1255 = vmax.f32 %v1251, 0.0
  %v1256 = vmax.f32 %v1252, 0.0
  %v1261 = vrot.slane %v1253, 4
  %v1262 = vrot.slane %v1254, 4
  %v1263 = vrot.slane %v1255, 4
  %v1264 = vrot.slane %v1256, 4
  %v1269 = vsel %vm395, %v632, %v1261
  %v1270 = vsel %vm395, %v633, %v1262
  %v1271 = vsel %vm395, %v634, %v1263
  %v1272 = vsel %vm395, %v635, %v1264
  %1273 = vrot.lane.b32.xlu0 %v1269, 17
  %v1274 = vpop.permute.xlu0 %1273
  %1275 = vrot.lane.b32.xlu0 %v1270, 17
  %v1276 = vpop.permute.xlu0 %1275
  %1277 = vrot.lane.b32.xlu0 %v1271, 17
  %v1278 = vpop.permute.xlu0 %1277
  %1279 = vrot.lane.b32.xlu0 %v1272, 17
  %v1280 = vpop.permute.xlu0 %1279
  %v1281 = vsel %vm91, %v1278, %v1280
  %v1282 = vsel %vm91, %v1276, %v1278
  %v1283 = vsel %vm91, %v1274, %v1276
  %v1284 = vsel %vm91, %v1280, %v1274
  %v1285 = vmul.f32 %v1284, %v99
  %v1286 = vmul.f32 %v1283, %v103
  %v1287 = vmul.f32 %v1282, %v107
  %v1288 = vmul.f32 %v1281, %v111
  %1289 = vrot.lane.b32.xlu0 %v1269, 16
  %v1290 = vpop.permute.xlu0 %1289
  %1291 = vrot.lane.b32.xlu0 %v1270, 16
  %v1292 = vpop.permute.xlu0 %1291
  %1293 = vrot.lane.b32.xlu0 %v1271, 16
  %v1294 = vpop.permute.xlu0 %1293
  %1295 = vrot.lane.b32.xlu0 %v1272, 16
  %v1296 = vpop.permute.xlu0 %1295
  %v1297 = vsel %vm124, %v1294, %v1296
  %v1298 = vsel %vm124, %v1292, %v1294
  %v1299 = vsel %vm124, %v1290, %v1292
  %v1300 = vsel %vm124, %v1296, %v1290
  %v1301 = vmul.f32 %v1300, %v132
  %v1302 = vmul.f32 %v1299, %v136
  %v1303 = vmul.f32 %v1298, %v140
  %v1304 = vmul.f32 %v1297, %v144
  %1305 = vrot.lane.b32.xlu0 %v1269, 15
  %v1306 = vpop.permute.xlu0 %1305
  %1307 = vrot.lane.b32.xlu0 %v1270, 15
  %v1308 = vpop.permute.xlu0 %1307
  %1309 = vrot.lane.b32.xlu0 %v1271, 15
  %v1310 = vpop.permute.xlu0 %1309
  %1311 = vrot.lane.b32.xlu0 %v1272, 15
  %v1312 = vpop.permute.xlu0 %1311
  %v1313 = vsel %vm157, %v1310, %v1312
  %v1314 = vsel %vm157, %v1308, %v1310
  %v1315 = vsel %vm157, %v1306, %v1308
  %v1316 = vsel %vm157, %v1312, %v1306
  %v1317 = vmul.f32 %v1316, %v165
  %v1318 = vmul.f32 %v1315, %v169
  %v1319 = vmul.f32 %v1314, %v173
  %v1320 = vmul.f32 %v1313, %v177
  %1321 = vrot.lane.b32.xlu0 %v1269, 1
  %v1322 = vpop.permute.xlu0 %1321
  %1323 = vrot.lane.b32.xlu0 %v1270, 1
  %v1324 = vpop.permute.xlu0 %1323
  %1325 = vrot.lane.b32.xlu0 %v1271, 1
  %v1326 = vpop.permute.xlu0 %1325
  %1327 = vrot.lane.b32.xlu0 %v1272, 1
  %v1328 = vpop.permute.xlu0 %1327
  %v1329 = vsel %vm190, %v1326, %v1328
  %v1330 = vsel %vm190, %v1324, %v1326
  %v1331 = vsel %vm190, %v1322, %v1324
  %v1332 = vsel %vm190, %v1328, %v1322
  %v1333 = vmul.f32 %v1332, %v198
  %v1334 = vmul.f32 %v1331, %v202
  %v1335 = vmul.f32 %v1330, %v206
  %v1336 = vmul.f32 %v1329, %v210
  %1337 = vrot.lane.b32.xlu0 %v1269, 127
  %v1338 = vpop.permute.xlu0 %1337
  %1339 = vrot.lane.b32.xlu0 %v1270, 127
  %v1340 = vpop.permute.xlu0 %1339
  %1341 = vrot.lane.b32.xlu0 %v1271, 127
  %v1342 = vpop.permute.xlu0 %1341
  %1343 = vrot.lane.b32.xlu0 %v1272, 127
  %v1344 = vpop.permute.xlu0 %1343
  %v1345 = vsel %vm223, %v1342, %v1344
  %v1346 = vsel %vm223, %v1340, %v1342
  %v1347 = vsel %vm223, %v1338, %v1340
  %v1348 = vsel %vm223, %v1344, %v1338
  %v1349 = vmul.f32 %v1347, %v231
  %v1350 = vmul.f32 %v1346, %v235
  %v1351 = vmul.f32 %v1345, %v239
  %v1352 = vmul.f32 %v1348, %v243
  %1353 = vrot.lane.b32.xlu0 %v1269, 113
  %v1354 = vpop.permute.xlu0 %1353
  %1355 = vrot.lane.b32.xlu0 %v1270, 113
  %v1356 = vpop.permute.xlu0 %1355
  %1357 = vrot.lane.b32.xlu0 %v1271, 113
  %v1358 = vpop.permute.xlu0 %1357
  %1359 = vrot.lane.b32.xlu0 %v1272, 113
  %v1360 = vpop.permute.xlu0 %1359
  %v1361 = vsel %vm256, %v1358, %v1360
  %v1362 = vsel %vm256, %v1356, %v1358
  %v1363 = vsel %vm256, %v1354, %v1356
  %v1364 = vsel %vm256, %v1360, %v1354
  %v1365 = vmul.f32 %v1363, %v264
  %v1366 = vmul.f32 %v1362, %v268
  %v1367 = vmul.f32 %v1361, %v272
  %v1368 = vmul.f32 %v1364, %v276
  %1369 = vrot.lane.b32.xlu0 %v1269, 112
  %v1370 = vpop.permute.xlu0 %1369
  %1371 = vrot.lane.b32.xlu0 %v1270, 112
  %v1372 = vpop.permute.xlu0 %1371
  %1373 = vrot.lane.b32.xlu0 %v1271, 112
  %v1374 = vpop.permute.xlu0 %1373
  %1375 = vrot.lane.b32.xlu0 %v1272, 112
  %v1376 = vpop.permute.xlu0 %1375
  %v1377 = vsel %vm289, %v1374, %v1376
  %v1378 = vsel %vm289, %v1372, %v1374
  %v1379 = vsel %vm289, %v1370, %v1372
  %v1380 = vsel %vm289, %v1376, %v1370
  %v1381 = vmul.f32 %v1379, %v297
  %v1382 = vmul.f32 %v1378, %v301
  %v1383 = vmul.f32 %v1377, %v305
  %v1384 = vmul.f32 %v1380, %v309
  %1385 = vrot.lane.b32.xlu0 %v1269, 111
  %v1386 = vpop.permute.xlu0 %1385
  %1387 = vrot.lane.b32.xlu0 %v1270, 111
  %v1388 = vpop.permute.xlu0 %1387
  %1389 = vrot.lane.b32.xlu0 %v1271, 111
  %v1390 = vpop.permute.xlu0 %1389
  %1391 = vrot.lane.b32.xlu0 %v1272, 111
  %v1392 = vpop.permute.xlu0 %1391
  %v1393 = vsel %vm322, %v1390, %v1392
  %v1394 = vsel %vm322, %v1388, %v1390
  %v1395 = vsel %vm322, %v1386, %v1388
  %v1396 = vsel %vm322, %v1392, %v1386
  %v1397 = vmul.f32 %v1395, %v330
  %v1398 = vmul.f32 %v1394, %v334
  %v1399 = vmul.f32 %v1393, %v338
  %v1400 = vmul.f32 %v1396, %v342
  %v1401 = vld [vmem:[%s12] sm:$0xf]
  %v1402 = vld [vmem:[%s13] sm:$0xf]
  %1404 = vset.pattern.permute.xlu0 0
  %1405 = vperm.xlu0 %1404, %v1402
  %v1406 = vpop.permute.xlu0 %1405
  %vm1408 = vcmask 588800
  %v1410 = vsel %vm1408, %v1401, 0
  %1412 = vmatprep.subr.mxu0 %v1286
  %1413 = vmatpush1.msra.mxu0 %v1285
  %1414 = vmatprep.subr.mxu0 %v1302
  %1415 = vmatpush1.msra.mxu0 %v1301
  %1416 = vmatprep.subr.mxu0 %v1318
  %1417 = vmatpush1.msra.mxu0 %v1317
  %1418 = vmatprep.subr.mxu0 %v1334
  %1419 = vmatpush1.msra.mxu0 %v1333
  %1420 = vmatprep.subr.mxu0 %v1270
  %1421 = vmatpush1.msra.mxu0 %v1269
  %1422 = vmatprep.subr.mxu0 %v1350
  %1423 = vmatpush1.msra.mxu0 %v1349
  %1424 = vmatprep.subr.mxu0 %v1366
  %1425 = vmatpush1.msra.mxu0 %v1365
  %1426 = vmatprep.subr.mxu0 %v1382
  %1427 = vmatpush1.msra.mxu0 %v1381
  %1428 = vmatprep.subr.mxu0 %v1398
  %1429 = vmatpush1.msra.mxu0 %v1397
  %1430 = vmatprep.subr.mxu0 0.0
  %1431 = vmatpush1.msra.mxu0 0.0
  %1432 = vmatprep.subr.mxu0 0.0
  %1433 = vmatpush1.msra.mxu0 0.0
  %1434 = vmatprep.subr.mxu0 0.0
  %1435 = vmatpush1.msra.mxu0 0.0
  %1436 = vmatprep.subr.mxu0 0.0
  %1437 = vmatpush1.msra.mxu0 0.0
  %1438 = vmatprep.subr.mxu0 0.0
  %1439 = vmatpush1.msra.mxu0 0.0
  %1440 = vmatprep.subr.mxu0 0.0
  %1441 = vmatpush1.msra.mxu0 0.0
  %1442 = vmatprep.subr.mxu0 0.0
  %1443 = vmatpush1.msra.mxu0 0.0
  %1444 = vmatprep.subr.mxu0 0.0
  %1445 = vmatpush1.msra.mxu0 0.0
  %1446 = vmatprep.subr.mxu0 0.0
  %1447 = vmatpush1.msra.mxu0 0.0
  %1448 = vmatprep.subr.mxu0 0.0
  %1449 = vmatpush1.msra.mxu0 0.0
  %1450 = vmatprep.subr.mxu0 0.0
  %1451 = vmatpush1.msra.mxu0 0.0
  %1452 = vmatprep.subr.mxu0 0.0
  %1453 = vmatpush1.msra.mxu0 0.0
  %1454 = vmatprep.subr.mxu0 0.0
  %1455 = vmatpush1.msra.mxu0 0.0
  %1456 = vmatprep.subr.mxu0 0.0
  %1457 = vmatpush1.msra.mxu0 0.0
  %1458 = vmatprep.subr.mxu0 0.0
  %1459 = vmatpush1.msra.mxu0 0.0
  %1460 = vmatprep.subr.mxu0 0.0
  %1461 = vmatpush1.msra.mxu0 0.0
  %1462 = vmatprep.subr.mxu0 0.0
  %1463 = vmatpush1.msra.mxu0 0.0
  %1464 = vmatprep.subr.mxu0 0.0
  %1465 = vmatpush1.msra.mxu0 0.0
  %1466 = vmatprep.subr.mxu0 0.0
  %1467 = vmatpush1.msra.mxu0 0.0
  %1468 = vmatprep.subr.mxu0 0.0
  %1469 = vmatpush1.msra.mxu0 0.0
  %1470 = vmatprep.subr.mxu0 0.0
  %1471 = vmatpush1.msra.mxu0 0.0
  %1472 = vmatprep.subr.mxu0 0.0
  %1473 = vmatpush1.msra.mxu0 0.0
  %1474 = vmatprep.subr.mxu0 0.0
  %1475 = vmatpush1.msra.mxu0 0.0
  %1476 = vmatprep.mubr.f32.mxu0 0.0
  %1477 = vmatmul.mubr.f32.gmra.mrb[0].mxu0 %v1410
  %v1478 = vpop.f32.mrb[0].mxu0
  %v1479 = vadd.f32 %v1406, %v1478
  %v1480 = vpop.f32.mrb[0].mxu0
  %v1481 = vadd.f32 %v1406, %v1480
  %1482 = vdwg.mxu0
  %1483 = vmatprep.subr.mxu0 %v1288
  %1484 = vmatpush1.msra.mxu0 %v1287
  %1485 = vmatprep.subr.mxu0 %v1304
  %1486 = vmatpush1.msra.mxu0 %v1303
  %1487 = vmatprep.subr.mxu0 %v1320
  %1488 = vmatpush1.msra.mxu0 %v1319
  %1489 = vmatprep.subr.mxu0 %v1336
  %1490 = vmatpush1.msra.mxu0 %v1335
  %1491 = vmatprep.subr.mxu0 %v1272
  %1492 = vmatpush1.msra.mxu0 %v1271
  %1493 = vmatprep.subr.mxu0 %v1352
  %1494 = vmatpush1.msra.mxu0 %v1351
  %1495 = vmatprep.subr.mxu0 %v1368
  %1496 = vmatpush1.msra.mxu0 %v1367
  %1497 = vmatprep.subr.mxu0 %v1384
  %1498 = vmatpush1.msra.mxu0 %v1383
  %1499 = vmatprep.subr.mxu0 %v1400
  %1500 = vmatpush1.msra.mxu0 %v1399
  %1501 = vmatprep.subr.mxu0 0.0
  %1502 = vmatpush1.msra.mxu0 0.0
  %1503 = vmatprep.subr.mxu0 0.0
  %1504 = vmatpush1.msra.mxu0 0.0
  %1505 = vmatprep.subr.mxu0 0.0
  %1506 = vmatpush1.msra.mxu0 0.0
  %1507 = vmatprep.subr.mxu0 0.0
  %1508 = vmatpush1.msra.mxu0 0.0
  %1509 = vmatprep.subr.mxu0 0.0
  %1510 = vmatpush1.msra.mxu0 0.0
  %1511 = vmatprep.subr.mxu0 0.0
  %1512 = vmatpush1.msra.mxu0 0.0
  %1513 = vmatprep.subr.mxu0 0.0
  %1514 = vmatpush1.msra.mxu0 0.0
  %1515 = vmatprep.subr.mxu0 0.0
  %1516 = vmatpush1.msra.mxu0 0.0
  %1517 = vmatprep.subr.mxu0 0.0
  %1518 = vmatpush1.msra.mxu0 0.0
  %1519 = vmatprep.subr.mxu0 0.0
  %1520 = vmatpush1.msra.mxu0 0.0
  %1521 = vmatprep.subr.mxu0 0.0
  %1522 = vmatpush1.msra.mxu0 0.0
  %1523 = vmatprep.subr.mxu0 0.0
  %1524 = vmatpush1.msra.mxu0 0.0
  %1525 = vmatprep.subr.mxu0 0.0
  %1526 = vmatpush1.msra.mxu0 0.0
  %1527 = vmatprep.subr.mxu0 0.0
  %1528 = vmatpush1.msra.mxu0 0.0
  %1529 = vmatprep.subr.mxu0 0.0
  %1530 = vmatpush1.msra.mxu0 0.0
  %1531 = vmatprep.subr.mxu0 0.0
  %1532 = vmatpush1.msra.mxu0 0.0
  %1533 = vmatprep.subr.mxu0 0.0
  %1534 = vmatpush1.msra.mxu0 0.0
  %1535 = vmatprep.subr.mxu0 0.0
  %1536 = vmatpush1.msra.mxu0 0.0
  %1537 = vmatprep.subr.mxu0 0.0
  %1538 = vmatpush1.msra.mxu0 0.0
  %1539 = vmatprep.subr.mxu0 0.0
  %1540 = vmatpush1.msra.mxu0 0.0
  %1541 = vmatprep.subr.mxu0 0.0
  %1542 = vmatpush1.msra.mxu0 0.0
  %1543 = vmatprep.subr.mxu0 0.0
  %1544 = vmatpush1.msra.mxu0 0.0
  %1545 = vmatprep.subr.mxu0 0.0
  %1546 = vmatpush1.msra.mxu0 0.0
  %1547 = vmatprep.mubr.f32.mxu0 0.0
  %1548 = vmatmul.mubr.f32.gmra.mrb[0].mxu0 %v1410
  %v1549 = vpop.f32.mrb[0].mxu0
  %v1550 = vadd.f32 %v1406, %v1549
  %v1551 = vpop.f32.mrb[0].mxu0
  %v1552 = vadd.f32 %v1406, %v1551
  %1553 = vdwg.mxu0
  %v1554 = vsel %vm395, %v1479, 0.0
  %v1555 = vsel %vm395, %v1481, 0.0
  %v1556 = vadd.f32 %v1554, %v1555
  %v1557 = vsel %vm395, %v1550, 0.0
  %v1558 = vadd.f32 %v1556, %v1557
  %v1559 = vsel %vm395, %v1552, 0.0
  %v1560 = vadd.f32 %v1558, %v1559
  %1561 = vadd.xlane.f32.xlu0 %v1560
  %v1562 = vpop.xlane.xlu0 %1561
  %v1563 = vmul.f32 %v1562, %v586
  %v1564 = vsub.f32 %v1479, %v1563
  %v1565 = vsub.f32 %v1481, %v1563
  %v1566 = vsub.f32 %v1550, %v1563
  %v1567 = vsub.f32 %v1552, %v1563
  %v1568 = vmul.f32 %v1564, %v1564
  %v1569 = vmul.f32 %v1565, %v1565
  %v1570 = vmul.f32 %v1566, %v1566
  %v1571 = vmul.f32 %v1567, %v1567
  %v1572 = vsel %vm395, %v1568, 0.0
  %v1573 = vsel %vm395, %v1569, 0.0
  %v1574 = vadd.f32 %v1572, %v1573
  %v1575 = vsel %vm395, %v1570, 0.0
  %v1576 = vadd.f32 %v1574, %v1575
  %v1577 = vsel %vm395, %v1571, 0.0
  %v1578 = vadd.f32 %v1576, %v1577
  %1579 = vadd.xlane.f32.xlu0 %v1578
  %v1580 = vpop.xlane.xlu0 %1579
  %v1581 = vmul.f32 %v1580, %v586
  %v1582 = vadd.f32 %v1581, 1e-05
  %v1583 = vrsqrt.pop %v1582
  %v1584 = vmul.f32 %v1564, %v1583
  %v1585 = vmul.f32 %v1565, %v1583
  %v1586 = vmul.f32 %v1566, %v1583
  %v1587 = vmul.f32 %v1567, %v1583
  %v1588 = vld [vmem:[%s14] sm:$0xf]
  %1590 = vset.pattern.permute.xlu0 0
  %1591 = vperm.xlu0 %1590, %v1588
  %v1592 = vpop.permute.xlu0 %1591
  %v1594 = vmul.f32 %v1584, %v1592
  %v1595 = vmul.f32 %v1585, %v1592
  %v1596 = vmul.f32 %v1586, %v1592
  %v1597 = vmul.f32 %v1587, %v1592
  %v1598 = vld [vmem:[%s15] sm:$0xf]
  %1600 = vset.pattern.permute.xlu0 0
  %1601 = vperm.xlu0 %1600, %v1598
  %v1602 = vpop.permute.xlu0 %1601
  %v1604 = vadd.f32 %v1594, %v1602
  %v1605 = vadd.f32 %v1595, %v1602
  %v1606 = vadd.f32 %v1596, %v1602
  %v1607 = vadd.f32 %v1597, %v1602
  %v1608 = vmax.f32 %v1604, 0.0
  %v1609 = vmax.f32 %v1605, 0.0
  %v1610 = vmax.f32 %v1606, 0.0
  %v1611 = vmax.f32 %v1607, 0.0
  %v1612 = vsel %vm395, %v1608, -inf
  %v1613 = vrot.slane %v1612, 4
  %v1614 = vmax.f32 %v1612, %v1613
  %v1615 = vrot.slane %v1614, 2
  %v1616 = vmax.f32 %v1614, %v1615
  %v1617 = vrot.slane %v1616, 1
  %v1618 = vmax.f32 %v1616, %v1617
  %v1619 = vsel %vm395, %v1609, -inf
  %v1620 = vrot.slane %v1619, 4
  %v1621 = vmax.f32 %v1619, %v1620
  %v1622 = vrot.slane %v1621, 2
  %v1623 = vmax.f32 %v1621, %v1622
  %v1624 = vrot.slane %v1623, 1
  %v1625 = vmax.f32 %v1623, %v1624
  %v1626 = vsel %vm395, %v1610, -inf
  %v1627 = vrot.slane %v1626, 4
  %v1628 = vmax.f32 %v1626, %v1627
  %v1629 = vrot.slane %v1628, 2
  %v1630 = vmax.f32 %v1628, %v1629
  %v1631 = vrot.slane %v1630, 1
  %v1632 = vmax.f32 %v1630, %v1631
  %v1633 = vsel %vm395, %v1611, -inf
  %v1634 = vrot.slane %v1633, 4
  %v1635 = vmax.f32 %v1633, %v1634
  %v1636 = vrot.slane %v1635, 2
  %v1637 = vmax.f32 %v1635, %v1636
  %v1638 = vrot.slane %v1637, 1
  %v1639 = vmax.f32 %v1637, %v1638
  %v1640 = vsub.f32 0.0, %v1618
  %v1641 = vsub.f32 0.0, %v1625
  %v1642 = vsub.f32 0.0, %v1632
  %v1643 = vsub.f32 0.0, %v1639
  %v1644 = vmul.f32 %v1640, 1.442695
  %v1645 = vpow.pop %v1644
  %v1646 = vmul.f32 %v1641, 1.442695
  %v1647 = vpow.pop %v1646
  %v1648 = vmul.f32 %v1642, 1.442695
  %v1649 = vpow.pop %v1648
  %v1650 = vmul.f32 %v1643, 1.442695
  %v1651 = vpow.pop %v1650
  %v1652 = vadd.f32 %v1645, 1.0
  %v1653 = vadd.f32 %v1647, 1.0
  %v1654 = vadd.f32 %v1649, 1.0
  %v1655 = vadd.f32 %v1651, 1.0
  %v1656 = vrcp.pop %v1652
  %v1657 = vmul.f32 1.0, %v1656
  %v1658 = vrcp.pop %v1653
  %v1659 = vmul.f32 1.0, %v1658
  %v1660 = vrcp.pop %v1654
  %v1661 = vmul.f32 1.0, %v1660
  %v1662 = vrcp.pop %v1655
  %v1663 = vmul.f32 1.0, %v1662
  %v1664 = vmul.f32 %v1608, %v1657
  %v1665 = vmul.f32 %v1609, %v1659
  %v1666 = vmul.f32 %v1610, %v1661
  %v1667 = vmul.f32 %v1611, %v1663
  %v1668 = vadd.f32 %v1664, %v1608
  %v1669 = vadd.f32 %v1665, %v1609
  %v1670 = vadd.f32 %v1666, %v1610
  %v1671 = vadd.f32 %v1667, %v1611
  %1672 = vrot.lane.b32.xlu0 %v1668, 17
  %v1673 = vpop.permute.xlu0 %1672
  %1674 = vrot.lane.b32.xlu0 %v1669, 17
  %v1675 = vpop.permute.xlu0 %1674
  %1676 = vrot.lane.b32.xlu0 %v1670, 17
  %v1677 = vpop.permute.xlu0 %1676
  %1678 = vrot.lane.b32.xlu0 %v1671, 17
  %v1679 = vpop.permute.xlu0 %1678
  %v1680 = vsel %vm91, %v1677, %v1679
  %v1681 = vsel %vm91, %v1675, %v1677
  %v1682 = vsel %vm91, %v1673, %v1675
  %v1683 = vsel %vm91, %v1679, %v1673
  %v1684 = vmul.f32 %v1683, %v99
  %v1685 = vmul.f32 %v1682, %v103
  %v1686 = vmul.f32 %v1681, %v107
  %v1687 = vmul.f32 %v1680, %v111
  %1688 = vrot.lane.b32.xlu0 %v1668, 16
  %v1689 = vpop.permute.xlu0 %1688
  %1690 = vrot.lane.b32.xlu0 %v1669, 16
  %v1691 = vpop.permute.xlu0 %1690
  %1692 = vrot.lane.b32.xlu0 %v1670, 16
  %v1693 = vpop.permute.xlu0 %1692
  %1694 = vrot.lane.b32.xlu0 %v1671, 16
  %v1695 = vpop.permute.xlu0 %1694
  %v1696 = vsel %vm124, %v1693, %v1695
  %v1697 = vsel %vm124, %v1691, %v1693
  %v1698 = vsel %vm124, %v1689, %v1691
  %v1699 = vsel %vm124, %v1695, %v1689
  %v1700 = vmul.f32 %v1699, %v132
  %v1701 = vmul.f32 %v1698, %v136
  %v1702 = vmul.f32 %v1697, %v140
  %v1703 = vmul.f32 %v1696, %v144
  %1704 = vrot.lane.b32.xlu0 %v1668, 15
  %v1705 = vpop.permute.xlu0 %1704
  %1706 = vrot.lane.b32.xlu0 %v1669, 15
  %v1707 = vpop.permute.xlu0 %1706
  %1708 = vrot.lane.b32.xlu0 %v1670, 15
  %v1709 = vpop.permute.xlu0 %1708
  %1710 = vrot.lane.b32.xlu0 %v1671, 15
  %v1711 = vpop.permute.xlu0 %1710
  %v1712 = vsel %vm157, %v1709, %v1711
  %v1713 = vsel %vm157, %v1707, %v1709
  %v1714 = vsel %vm157, %v1705, %v1707
  %v1715 = vsel %vm157, %v1711, %v1705
  %v1716 = vmul.f32 %v1715, %v165
  %v1717 = vmul.f32 %v1714, %v169
  %v1718 = vmul.f32 %v1713, %v173
  %v1719 = vmul.f32 %v1712, %v177
  %1720 = vrot.lane.b32.xlu0 %v1668, 1
  %v1721 = vpop.permute.xlu0 %1720
  %1722 = vrot.lane.b32.xlu0 %v1669, 1
  %v1723 = vpop.permute.xlu0 %1722
  %1724 = vrot.lane.b32.xlu0 %v1670, 1
  %v1725 = vpop.permute.xlu0 %1724
  %1726 = vrot.lane.b32.xlu0 %v1671, 1
  %v1727 = vpop.permute.xlu0 %1726
  %v1728 = vsel %vm190, %v1725, %v1727
  %v1729 = vsel %vm190, %v1723, %v1725
  %v1730 = vsel %vm190, %v1721, %v1723
  %v1731 = vsel %vm190, %v1727, %v1721
  %v1732 = vmul.f32 %v1731, %v198
  %v1733 = vmul.f32 %v1730, %v202
  %v1734 = vmul.f32 %v1729, %v206
  %v1735 = vmul.f32 %v1728, %v210
  %1736 = vrot.lane.b32.xlu0 %v1668, 127
  %v1737 = vpop.permute.xlu0 %1736
  %1738 = vrot.lane.b32.xlu0 %v1669, 127
  %v1739 = vpop.permute.xlu0 %1738
  %1740 = vrot.lane.b32.xlu0 %v1670, 127
  %v1741 = vpop.permute.xlu0 %1740
  %1742 = vrot.lane.b32.xlu0 %v1671, 127
  %v1743 = vpop.permute.xlu0 %1742
  %v1744 = vsel %vm223, %v1741, %v1743
  %v1745 = vsel %vm223, %v1739, %v1741
  %v1746 = vsel %vm223, %v1737, %v1739
  %v1747 = vsel %vm223, %v1743, %v1737
  %v1748 = vmul.f32 %v1746, %v231
  %v1749 = vmul.f32 %v1745, %v235
  %v1750 = vmul.f32 %v1744, %v239
  %v1751 = vmul.f32 %v1747, %v243
  %1752 = vrot.lane.b32.xlu0 %v1668, 113
  %v1753 = vpop.permute.xlu0 %1752
  %1754 = vrot.lane.b32.xlu0 %v1669, 113
  %v1755 = vpop.permute.xlu0 %1754
  %1756 = vrot.lane.b32.xlu0 %v1670, 113
  %v1757 = vpop.permute.xlu0 %1756
  %1758 = vrot.lane.b32.xlu0 %v1671, 113
  %v1759 = vpop.permute.xlu0 %1758
  %v1760 = vsel %vm256, %v1757, %v1759
  %v1761 = vsel %vm256, %v1755, %v1757
  %v1762 = vsel %vm256, %v1753, %v1755
  %v1763 = vsel %vm256, %v1759, %v1753
  %v1764 = vmul.f32 %v1762, %v264
  %v1765 = vmul.f32 %v1761, %v268
  %v1766 = vmul.f32 %v1760, %v272
  %v1767 = vmul.f32 %v1763, %v276
  %1768 = vrot.lane.b32.xlu0 %v1668, 112
  %v1769 = vpop.permute.xlu0 %1768
  %1770 = vrot.lane.b32.xlu0 %v1669, 112
  %v1771 = vpop.permute.xlu0 %1770
  %1772 = vrot.lane.b32.xlu0 %v1670, 112
  %v1773 = vpop.permute.xlu0 %1772
  %1774 = vrot.lane.b32.xlu0 %v1671, 112
  %v1775 = vpop.permute.xlu0 %1774
  %v1776 = vsel %vm289, %v1773, %v1775
  %v1777 = vsel %vm289, %v1771, %v1773
  %v1778 = vsel %vm289, %v1769, %v1771
  %v1779 = vsel %vm289, %v1775, %v1769
  %v1780 = vmul.f32 %v1778, %v297
  %v1781 = vmul.f32 %v1777, %v301
  %v1782 = vmul.f32 %v1776, %v305
  %v1783 = vmul.f32 %v1779, %v309
  %1784 = vrot.lane.b32.xlu0 %v1668, 111
  %v1785 = vpop.permute.xlu0 %1784
  %1786 = vrot.lane.b32.xlu0 %v1669, 111
  %v1787 = vpop.permute.xlu0 %1786
  %1788 = vrot.lane.b32.xlu0 %v1670, 111
  %v1789 = vpop.permute.xlu0 %1788
  %1790 = vrot.lane.b32.xlu0 %v1671, 111
  %v1791 = vpop.permute.xlu0 %1790
  %v1792 = vsel %vm322, %v1789, %v1791
  %v1793 = vsel %vm322, %v1787, %v1789
  %v1794 = vsel %vm322, %v1785, %v1787
  %v1795 = vsel %vm322, %v1791, %v1785
  %v1796 = vmul.f32 %v1794, %v330
  %v1797 = vmul.f32 %v1793, %v334
  %v1798 = vmul.f32 %v1792, %v338
  %v1799 = vmul.f32 %v1795, %v342
  %v1804 = vrot.slane %v1700, 4
  %v1805 = vrot.slane %v1701, 4
  %v1806 = vrot.slane %v1702, 4
  %v1807 = vrot.slane %v1703, 4
  %v1816 = vrot.slane %v1732, 4
  %v1817 = vrot.slane %v1733, 4
  %v1818 = vrot.slane %v1734, 4
  %v1819 = vrot.slane %v1735, 4
  %v1828 = vrot.slane %v1748, 4
  %v1829 = vrot.slane %v1749, 4
  %v1830 = vrot.slane %v1750, 4
  %v1831 = vrot.slane %v1751, 4
  %v1840 = vrot.slane %v1780, 4
  %v1841 = vrot.slane %v1781, 4
  %v1842 = vrot.slane %v1782, 4
  %v1843 = vrot.slane %v1783, 4
  %v1848 = vsel %vm395, %v1684, %v1804
  %v1849 = vsel %vm395, %v1685, %v1805
  %v1850 = vsel %vm395, %v1686, %v1806
  %v1851 = vsel %vm395, %v1687, %v1807
  %v1852 = vsel %vm395, %v1716, %v1816
  %v1853 = vsel %vm395, %v1717, %v1817
  %v1854 = vsel %vm395, %v1718, %v1818
  %v1855 = vsel %vm395, %v1719, %v1819
  %v1856 = vsel %vm395, %v1668, %v1828
  %v1857 = vsel %vm395, %v1669, %v1829
  %v1858 = vsel %vm395, %v1670, %v1830
  %v1859 = vsel %vm395, %v1671, %v1831
  %v1860 = vsel %vm395, %v1764, %v1840
  %v1861 = vsel %vm395, %v1765, %v1841
  %v1862 = vsel %vm395, %v1766, %v1842
  %v1863 = vsel %vm395, %v1767, %v1843
  %v1864 = vld [vmem:[%s16] sm:$0xf]
  %v1865 = vld [vmem:[%s17] sm:$0xf]
  %1867 = vset.pattern.permute.xlu0 0
  %1868 = vperm.xlu0 %1867, %v1865
  %v1869 = vpop.permute.xlu0 %1868
  %v1872 = vsel %vm419, %v1864, 0
  %v1875 = vsel %vm395, %v1796, 0
  %v1878 = vsel %vm395, %v1797, 0
  %v1881 = vsel %vm395, %v1798, 0
  %v1884 = vsel %vm395, %v1799, 0
  %1886 = vmatprep.subr.mxu0 %v1849
  %1887 = vmatpush1.msra.mxu0 %v1848
  %1888 = vmatprep.subr.mxu0 %v1853
  %1889 = vmatpush1.msra.mxu0 %v1852
  %1890 = vmatprep.subr.mxu0 %v1857
  %1891 = vmatpush1.msra.mxu0 %v1856
  %1892 = vmatprep.subr.mxu0 %v1861
  %1893 = vmatpush1.msra.mxu0 %v1860
  %1894 = vmatprep.subr.mxu0 %v1878
  %1895 = vmatpush1.msra.mxu0 %v1875
  %1896 = vmatprep.subr.mxu0 0.0
  %1897 = vmatpush1.msra.mxu0 0.0
  %1898 = vmatprep.subr.mxu0 0.0
  %1899 = vmatpush1.msra.mxu0 0.0
  %1900 = vmatprep.subr.mxu0 0.0
  %1901 = vmatpush1.msra.mxu0 0.0
  %1902 = vmatprep.subr.mxu0 0.0
  %1903 = vmatpush1.msra.mxu0 0.0
  %1904 = vmatprep.subr.mxu0 0.0
  %1905 = vmatpush1.msra.mxu0 0.0
  %1906 = vmatprep.subr.mxu0 0.0
  %1907 = vmatpush1.msra.mxu0 0.0
  %1908 = vmatprep.subr.mxu0 0.0
  %1909 = vmatpush1.msra.mxu0 0.0
  %1910 = vmatprep.subr.mxu0 0.0
  %1911 = vmatpush1.msra.mxu0 0.0
  %1912 = vmatprep.subr.mxu0 0.0
  %1913 = vmatpush1.msra.mxu0 0.0
  %1914 = vmatprep.subr.mxu0 0.0
  %1915 = vmatpush1.msra.mxu0 0.0
  %1916 = vmatprep.subr.mxu0 0.0
  %1917 = vmatpush1.msra.mxu0 0.0
  %1918 = vmatprep.subr.mxu0 0.0
  %1919 = vmatpush1.msra.mxu0 0.0
  %1920 = vmatprep.subr.mxu0 0.0
  %1921 = vmatpush1.msra.mxu0 0.0
  %1922 = vmatprep.subr.mxu0 0.0
  %1923 = vmatpush1.msra.mxu0 0.0
  %1924 = vmatprep.subr.mxu0 0.0
  %1925 = vmatpush1.msra.mxu0 0.0
  %1926 = vmatprep.subr.mxu0 0.0
  %1927 = vmatpush1.msra.mxu0 0.0
  %1928 = vmatprep.subr.mxu0 0.0
  %1929 = vmatpush1.msra.mxu0 0.0
  %1930 = vmatprep.subr.mxu0 0.0
  %1931 = vmatpush1.msra.mxu0 0.0
  %1932 = vmatprep.subr.mxu0 0.0
  %1933 = vmatpush1.msra.mxu0 0.0
  %1934 = vmatprep.subr.mxu0 0.0
  %1935 = vmatpush1.msra.mxu0 0.0
  %1936 = vmatprep.subr.mxu0 0.0
  %1937 = vmatpush1.msra.mxu0 0.0
  %1938 = vmatprep.subr.mxu0 0.0
  %1939 = vmatpush1.msra.mxu0 0.0
  %1940 = vmatprep.subr.mxu0 0.0
  %1941 = vmatpush1.msra.mxu0 0.0
  %1942 = vmatprep.subr.mxu0 0.0
  %1943 = vmatpush1.msra.mxu0 0.0
  %1944 = vmatprep.subr.mxu0 0.0
  %1945 = vmatpush1.msra.mxu0 0.0
  %1946 = vmatprep.subr.mxu0 0.0
  %1947 = vmatpush1.msra.mxu0 0.0
  %1948 = vmatprep.subr.mxu0 0.0
  %1949 = vmatpush1.msra.mxu0 0.0
  %1950 = vmatprep.mubr.f32.mxu0 0.0
  %1951 = vmatmul.mubr.f32.gmra.mrb[0].mxu0 %v1872
  %v1952 = vpop.f32.mrb[0].mxu0
  %v1953 = vadd.f32 %v1869, %v1952
  %v1954 = vpop.f32.mrb[0].mxu0
  %v1955 = vadd.f32 %v1869, %v1954
  %1956 = vdwg.mxu0
  %1957 = vmatprep.subr.mxu0 %v1851
  %1958 = vmatpush1.msra.mxu0 %v1850
  %1959 = vmatprep.subr.mxu0 %v1855
  %1960 = vmatpush1.msra.mxu0 %v1854
  %1961 = vmatprep.subr.mxu0 %v1859
  %1962 = vmatpush1.msra.mxu0 %v1858
  %1963 = vmatprep.subr.mxu0 %v1863
  %1964 = vmatpush1.msra.mxu0 %v1862
  %1965 = vmatprep.subr.mxu0 %v1884
  %1966 = vmatpush1.msra.mxu0 %v1881
  %1967 = vmatprep.subr.mxu0 0.0
  %1968 = vmatpush1.msra.mxu0 0.0
  %1969 = vmatprep.subr.mxu0 0.0
  %1970 = vmatpush1.msra.mxu0 0.0
  %1971 = vmatprep.subr.mxu0 0.0
  %1972 = vmatpush1.msra.mxu0 0.0
  %1973 = vmatprep.subr.mxu0 0.0
  %1974 = vmatpush1.msra.mxu0 0.0
  %1975 = vmatprep.subr.mxu0 0.0
  %1976 = vmatpush1.msra.mxu0 0.0
  %1977 = vmatprep.subr.mxu0 0.0
  %1978 = vmatpush1.msra.mxu0 0.0
  %1979 = vmatprep.subr.mxu0 0.0
  %1980 = vmatpush1.msra.mxu0 0.0
  %1981 = vmatprep.subr.mxu0 0.0
  %1982 = vmatpush1.msra.mxu0 0.0
  %1983 = vmatprep.subr.mxu0 0.0
  %1984 = vmatpush1.msra.mxu0 0.0
  %1985 = vmatprep.subr.mxu0 0.0
  %1986 = vmatpush1.msra.mxu0 0.0
  %1987 = vmatprep.subr.mxu0 0.0
  %1988 = vmatpush1.msra.mxu0 0.0
  %1989 = vmatprep.subr.mxu0 0.0
  %1990 = vmatpush1.msra.mxu0 0.0
  %1991 = vmatprep.subr.mxu0 0.0
  %1992 = vmatpush1.msra.mxu0 0.0
  %1993 = vmatprep.subr.mxu0 0.0
  %1994 = vmatpush1.msra.mxu0 0.0
  %1995 = vmatprep.subr.mxu0 0.0
  %1996 = vmatpush1.msra.mxu0 0.0
  %1997 = vmatprep.subr.mxu0 0.0
  %1998 = vmatpush1.msra.mxu0 0.0
  %1999 = vmatprep.subr.mxu0 0.0
  %2000 = vmatpush1.msra.mxu0 0.0
  %2001 = vmatprep.subr.mxu0 0.0
  %2002 = vmatpush1.msra.mxu0 0.0
  %2003 = vmatprep.subr.mxu0 0.0
  %2004 = vmatpush1.msra.mxu0 0.0
  %2005 = vmatprep.subr.mxu0 0.0
  %2006 = vmatpush1.msra.mxu0 0.0
  %2007 = vmatprep.subr.mxu0 0.0
  %2008 = vmatpush1.msra.mxu0 0.0
  %2009 = vmatprep.subr.mxu0 0.0
  %2010 = vmatpush1.msra.mxu0 0.0
  %2011 = vmatprep.subr.mxu0 0.0
  %2012 = vmatpush1.msra.mxu0 0.0
  %2013 = vmatprep.subr.mxu0 0.0
  %2014 = vmatpush1.msra.mxu0 0.0
  %2015 = vmatprep.subr.mxu0 0.0
  %2016 = vmatpush1.msra.mxu0 0.0
  %2017 = vmatprep.subr.mxu0 0.0
  %2018 = vmatpush1.msra.mxu0 0.0
  %2019 = vmatprep.subr.mxu0 0.0
  %2020 = vmatpush1.msra.mxu0 0.0
  %2021 = vmatprep.mubr.f32.mxu0 0.0
  %2022 = vmatmul.mubr.f32.gmra.mrb[0].mxu0 %v1872
  %v2023 = vpop.f32.mrb[0].mxu0
  %v2024 = vadd.f32 %v1869, %v2023
  %v2025 = vpop.f32.mrb[0].mxu0
  %v2026 = vadd.f32 %v1869, %v2025
  %2027 = vdwg.mxu0
  %v2028 = vsel %vm395, %v1953, 0.0
  %v2029 = vsel %vm395, %v1955, 0.0
  %v2030 = vadd.f32 %v2028, %v2029
  %v2031 = vsel %vm395, %v2024, 0.0
  %v2032 = vadd.f32 %v2030, %v2031
  %v2033 = vsel %vm395, %v2026, 0.0
  %v2034 = vadd.f32 %v2032, %v2033
  %2035 = vadd.xlane.f32.xlu0 %v2034
  %v2036 = vpop.xlane.xlu0 %2035
  %v2037 = vmul.f32 %v2036, %v586
  %v2038 = vsub.f32 %v1953, %v2037
  %v2039 = vsub.f32 %v1955, %v2037
  %v2040 = vsub.f32 %v2024, %v2037
  %v2041 = vsub.f32 %v2026, %v2037
  %v2042 = vmul.f32 %v2038, %v2038
  %v2043 = vmul.f32 %v2039, %v2039
  %v2044 = vmul.f32 %v2040, %v2040
  %v2045 = vmul.f32 %v2041, %v2041
  %v2046 = vsel %vm395, %v2042, 0.0
  %v2047 = vsel %vm395, %v2043, 0.0
  %v2048 = vadd.f32 %v2046, %v2047
  %v2049 = vsel %vm395, %v2044, 0.0
  %v2050 = vadd.f32 %v2048, %v2049
  %v2051 = vsel %vm395, %v2045, 0.0
  %v2052 = vadd.f32 %v2050, %v2051
  %2053 = vadd.xlane.f32.xlu0 %v2052
  %v2054 = vpop.xlane.xlu0 %2053
  %v2055 = vmul.f32 %v2054, %v586
  %v2056 = vadd.f32 %v2055, 1e-05
  %v2057 = vrsqrt.pop %v2056
  %v2058 = vmul.f32 %v2038, %v2057
  %v2059 = vmul.f32 %v2039, %v2057
  %v2060 = vmul.f32 %v2040, %v2057
  %v2061 = vmul.f32 %v2041, %v2057
  %v2062 = vld [vmem:[%s18] sm:$0xf]
  %2064 = vset.pattern.permute.xlu0 0
  %2065 = vperm.xlu0 %2064, %v2062
  %v2066 = vpop.permute.xlu0 %2065
  %v2068 = vmul.f32 %v2058, %v2066
  %v2069 = vmul.f32 %v2059, %v2066
  %v2070 = vmul.f32 %v2060, %v2066
  %v2071 = vmul.f32 %v2061, %v2066
  %v2072 = vld [vmem:[%s19] sm:$0xf]
  %2074 = vset.pattern.permute.xlu0 0
  %2075 = vperm.xlu0 %2074, %v2072
  %v2076 = vpop.permute.xlu0 %2075
  %v2078 = vadd.f32 %v2068, %v2076
  %v2079 = vadd.f32 %v2069, %v2076
  %v2080 = vadd.f32 %v2070, %v2076
  %v2081 = vadd.f32 %v2071, %v2076
  %v2082 = vmax.f32 %v2078, 0.0
  %v2083 = vmax.f32 %v2079, 0.0
  %v2084 = vmax.f32 %v2080, 0.0
  %v2085 = vmax.f32 %v2081, 0.0
  %v2090 = vcombine.low %v2082, %v2083
  %v2091 = vcombine.low %v2084, %v2085
  %2094 = vst [vmem:[%s20] sm:$0xff] %v2090
  %2095 = vst [vmem:[%s20 + $0x8] sm:$0xff] %v2091
  // Predicated region
  $region82: #{edge_forward.1} parent=0 // pred_check
    _
  $region83: #{edge_forward.1} parent=0 // pred_check_branch
    %2097 = sbr.rel (0) target = $region85
  $region84: #{edge_forward.1} parent=0 // pred_region
    _
  $region85: #{edge_forward.1} parent=0 // pred_fallthru
    _
  // Predicated region
  $region86: #{edge_forward.1} parent=0 // pred_check
    _
  $region87: #{edge_forward.1} parent=0 // pred_check_branch
    %2099 = sbr.rel (0) target = $region89
  $region88: #{edge_forward.1} parent=0 // pred_region
    _
  $region89: #{edge_forward.1} parent=0 // pred_fallthru
    _

</llo_original>
